<compile_context>
chip_gen: v7x
topology: tpu7x:2x2x1
jax: 0.10.0
libtpu: 0.0.40
codegen_flags: <defaults>
</compile_context>

<pallas_src>
import functools

import jax
import jax.numpy as jnp
from jax.experimental import pallas as pl
from jax.experimental.pallas import tpu as pltpu


def _coset_reduce(val, op, stride, n):
    """Exact reduction over the lane coset {c, c+stride, ..., c+(n-1)*stride}.

    The last axis of `val` has length n*stride; the result is replicated across
    each coset (out[..., k*stride + c] == reduce_k' val[..., k'*stride + c]).
    Uses log2(n) cyclic XLU rotates when n is a power of two, else n-1 rotates.
    """
    if n == 1:
        return val
    if n & (n - 1) == 0:                      # power-of-two butterfly
        shift = stride
        while shift < stride * n:
            val = op(val, pltpu.roll(val, shift, axis=1))
            shift *= 2
        return val
    acc = val                                 # general n: n-1 rotates of the original
    for i in range(1, n):
        acc = op(acc, pltpu.roll(val, i * stride, axis=1))
    return acc


def _attentive_pool_kernel(x_ref, w1b_ref, wcb_ref, b_ref, o_ref, *,
                           n_neigh, n_feat, approx_recip):
    # x_ref:   (1, TN, K*C)   bf16  -- TN tokens, lanes = (neighbor, channel) flat
    # w1b_ref: (K*C, K*C)     bf16  -- kron(I_K, w1^T)   (grid-invariant)
    # wcb_ref: (d_out, K*C)   f32   -- tile_K(bn_scale * conv_w)  (NO /K: the
    #                                  matmul sums the K-replicated terms)
    # b_ref:   (d_out, 1)     f32   -- folded conv bias + BN shift
    # o_ref:   (1, d_out, TN) f32   -- lane-dense (over TN) transposed output
    x_bf = x_ref[0]                                           # (TN, KC) bf16

    # fc1: bf16 x bf16 -> f32 accumulate on the MXU, one lane-dense GEMM with a
    # K*C-deep (block-diagonal) contraction and large streaming M.
    att = jax.lax.dot_general(
        x_bf, w1b_ref[...],
        dimension_numbers=(((1,), (0,)), ((), ())),
        preferred_element_type=jnp.float32)                   # (TN, KC) f32

    # Softmax over the neighbor axis == over the stride-C lane coset.
    m = _coset_reduce(att, jnp.maximum, n_feat, n_neigh)      # exact per-(r,c) max
    e = jnp.exp(att - m)                                      # (TN, KC) f32
    # TODO(synk): if a bundle dump shows the XLU as the binding slot, move this
    # sum onto the MXU with a grid-invariant kron(ones(K,K), I_C) weight and
    # keep only the max reduction on the XLU.
    s = _coset_reduce(e, jnp.add, n_feat, n_neigh)            # denom, K-replicated

    # Un-normalized, un-reduced weighted features; the neighbor sum is folded
    # into the conv matmul below, so no third coset reduction is needed.
    # approx=True -> single EUP vrcp (s >= 1 after max subtraction, error benign).
    q = x_bf.astype(jnp.float32) * (e * pl.reciprocal(s, approx=approx_recip))

    # 1x1 conv + folded BatchNorm, emitted transposed so the store is lane-dense
    # over TN and no output transpose is needed in the wrapper.
    # TODO(synk): verify in the bundle that this ((d_out,KC)x(TN,KC)->(d_out,TN))
    # contraction does not force a relayout of q; if it does, compare against the
    # (TN,d_out) emission + narrow masked store.
    z = jax.lax.dot_general(
        wcb_ref[...], q,
        dimension_numbers=(((1,), (1,)), ((), ())),
        preferred_element_type=jnp.float32)                   # (d_out, TN)
    y = z + b_ref[...]
    o_ref[0] = jnp.where(y >= 0.0, y, 0.2 * y)                # leaky_relu(0.2)


def _round_up(x, m):
    return ((x + m - 1) // m) * m


def _choose_tiling(n_points, max_tile, batch):
    """Pick (tile_n, padded_N). tile_n is a multiple of 128 (or full N if N<128)."""
    if n_points < 128:
        return n_points, n_points             # single full-N block (full-dim blocks OK)
    max_tile = max(128, (max_tile // 128) * 128)
    tile = min(max_tile, _round_up(n_points, 128))
    # v7x has 2 TensorCores per chip: when batch == 1, make sure the N axis
    # contributes >= 2 "parallel" grid steps so both cores get work.
    if batch == 1:
        while tile > 128 and -(-n_points // tile) < 2:
            tile = max(128, ((tile // 2) // 128) * 128)
    n_pad = _round_up(n_points, tile)
    return tile, n_pad


def attentive_pooling(x, w1, wc, bc, gamma, beta, run_mean, run_var,
                      *, eps=1e-6, max_tile_n=2048, channels_last=False,
                      approx_recip=True):
    """Fused AttentivePooling forward (inference-mode BatchNorm, eps=1e-6).

    x: (B, C, N, K) NCHW (PyTorch convention), or (B, N, K, C) if
       channels_last=True (lets an upstream producer skip the layout round trip).
    Returns (B, d_out, N, 1) float32, matching the PyTorch module output.
    """
    if channels_last:
        B, N, K, C = x.shape
    else:
        B, C, N, K = x.shape
    d_out = wc.shape[0]
    KC = K * C
    f32 = jnp.float32

    # ---- wrapper-side layout + one-off parameter folding ----
    if channels_last:
        x_rows = x.reshape(B, N, KC).astype(jnp.bfloat16)
    else:
        # TODO(synk): this transpose is a full extra HBM read+write of x outside
        # the kernel; require channels_last from the producer to eliminate it.
        x_rows = jnp.transpose(x, (0, 2, 3, 1)).reshape(B, N, KC).astype(jnp.bfloat16)

    # fc1 as a single lane-dense bf16 GEMM: block-diagonal kron(I_K, w1^T).
    w1_big = jnp.kron(jnp.eye(K, dtype=f32), w1.astype(f32).T).astype(jnp.bfloat16)

    # Fold BatchNorm (inference) into the 1x1 conv (bit-identical math).
    scale = gamma.astype(f32) / jnp.sqrt(run_var.astype(f32) + eps)       # (d_out,)
    wc_f = wc.astype(f32) * scale[:, None]                                # (d_out, C)
    b_f = (scale * (bc.astype(f32) - run_mean.astype(f32))
           + beta.astype(f32)).reshape(d_out, 1)                          # (d_out, 1)
    # q arrives K-replicated and UN-summed over neighbors: tiling wc K times
    # (without /K) makes the conv matmul perform the neighbor sum on the MXU.
    wc_big = jnp.tile(wc_f, (1, K))                                       # (d_out, KC)

    tile_n, n_pad = _choose_tiling(N, max_tile_n, B)
    if n_pad != N:
        # Zero rows are harmless: softmax over zeros is finite; padded outputs
        # are sliced off below.
        x_rows = jnp.pad(x_rows, ((0, 0), (0, n_pad - N), (0, 0)))
    grid = (B, n_pad // tile_n)

    out = pl.pallas_call(
        functools.partial(_attentive_pool_kernel, n_neigh=K, n_feat=C,
                          approx_recip=approx_recip),
        out_shape=jax.ShapeDtypeStruct((B, d_out, n_pad), jnp.float32),
        grid_spec=pltpu.PrefetchScalarGridSpec(
            num_scalar_prefetch=0,
            grid=grid,
            in_specs=[
                pl.BlockSpec((1, tile_n, KC), lambda b, i: (b, i, 0)),
                # Grid-invariant weight blocks (constant index_map); tiny.
                pl.BlockSpec((KC, KC), lambda b, i: (0, 0)),
                pl.BlockSpec((d_out, KC), lambda b, i: (0, 0)),
                pl.BlockSpec((d_out, 1), lambda b, i: (0, 0)),
            ],
            out_specs=pl.BlockSpec((1, d_out, tile_n), lambda b, i: (b, 0, i)),
        ),
        compiler_params=pltpu.CompilerParams(
            dimension_semantics=("parallel", "parallel"),
            vmem_limit_bytes=32 * 1024 * 1024),
    )(x_rows, w1_big, wc_big, b_f)

    if n_pad != N:
        out = out[:, :, :N]
    # (B, d_out, N) -> (B, d_out, N, 1): already d_out-major, no output transpose.
    return out[..., None]


def _reference(x, w1, wc, bc, gamma, beta, run_mean, run_var, eps=1e-6):
    B, C, N, K = x.shape
    hi = jax.lax.Precision.HIGHEST
    xr = jnp.transpose(x, (0, 2, 3, 1)).reshape(-1, K, C)
    att = jnp.einsum('rkc,jc->rkj', xr, w1, precision=hi)
    score = jax.nn.softmax(att, axis=1)
    pooled = jnp.sum(xr * score, axis=1)
    z = jnp.einsum('rc,dc->rd', pooled, wc, precision=hi) + bc
    zn = gamma * (z - run_mean) / jnp.sqrt(run_var + eps) + beta
    y = jnp.where(zn >= 0, zn, 0.2 * zn)
    return jnp.transpose(y.reshape(B, N, -1), (0, 2, 1))[..., None]


if __name__ == "__main__":
    # Small shapes consistent with the module's forward:
    # batch=2, n_feature=16, num_points=512, num_neigh=8, d_out=8  (K*C = 128 lanes).
    B, C, N, K = 2, 16, 512, 8
    D_OUT = 8

    key = jax.random.PRNGKey(0)
    k_x, k_w1, k_wc, k_bc, k_g, k_b, k_m, k_v = jax.random.split(key, 8)

    x = jax.random.normal(k_x, (B, C, N, K), dtype=jnp.float32)

    # Deterministic synthetic parameters (shapes from the module __init__).
    w1 = 0.1 * jax.random.normal(k_w1, (C, C), dtype=jnp.float32)           # fc1.weight
    wc = 0.1 * jax.random.normal(k_wc, (D_OUT, C), dtype=jnp.float32)       # conv1.weight (1x1)
    bc = 0.05 * jax.random.normal(k_bc, (D_OUT,), dtype=jnp.float32)        # conv1.bias
    gamma = 1.0 + 0.1 * jax.random.normal(k_g, (D_OUT,), dtype=jnp.float32)     # bn1.weight
    beta = 0.1 * jax.random.normal(k_b, (D_OUT,), dtype=jnp.float32)            # bn1.bias
    run_mean = 0.1 * jax.random.normal(k_m, (D_OUT,), dtype=jnp.float32)        # bn1.running_mean
    run_var = 0.5 + jnp.abs(jax.random.normal(k_v, (D_OUT,), dtype=jnp.float32))  # bn1.running_var

    # Default (fast) path: approximate EUP reciprocal for the softmax denominator.
    out_fast = attentive_pooling(x, w1, wc, bc, gamma, beta, run_mean, run_var,
                                 approx_recip=True)
    # Exact-reciprocal path: validates all structural math to tight tolerance.
    out_exact = attentive_pooling(x, w1, wc, bc, gamma, beta, run_mean, run_var,
                                  approx_recip=False)
    out_fast, out_exact = jax.block_until_ready((out_fast, out_exact))

    # Reference consumes the same bf16-rounded x AND bf16-rounded fc1 weight the
    # kernel uses (bf16xbf16 products are exact in f32), so the exact-path check
    # isolates in-kernel f32 accumulation-order differences only.
    x_rt = x.astype(jnp.bfloat16).astype(jnp.float32)
    w1_rt = w1.astype(jnp.bfloat16).astype(jnp.float32)
    ref = _reference(x_rt, w1_rt, wc, bc, gamma, beta, run_mean, run_var)

    assert out_fast.shape == (B, D_OUT, N, 1), out_fast.shape
    assert out_exact.shape == (B, D_OUT, N, 1), out_exact.shape

    err_exact = float(jnp.max(jnp.abs(out_exact - ref)))
    assert jnp.allclose(out_exact, ref, atol=1e-4, rtol=1e-4), (
        "exact-path mismatch vs reference, max abs diff = %e" % err_exact)

    # Looser bound for the default fast path: covers the EUP approximate
    # reciprocal used for the softmax denominator (s >= 1, benign error).
    err_fast = float(jnp.max(jnp.abs(out_fast - ref)))
    assert jnp.allclose(out_fast, ref, atol=2e-2, rtol=2e-2), (
        "fast-path mismatch vs reference, max abs diff = %e" % err_fast)

    print("KERNEL_OK")
</pallas_src>

<mosaic_0001>
module attributes {stable_mosaic.version = 11 : i64} {
  func.func @_attentive_pool_kernel(%arg0: i32, %arg1: i32, %arg2: memref<1x512x128xbf16, #tpu.memory_space<vmem>>, %arg3: memref<128x128xbf16, #tpu.memory_space<vmem>>, %arg4: memref<8x128xf32, #tpu.memory_space<vmem>>, %arg5: memref<8x1xf32, #tpu.memory_space<vmem>>, %arg6: memref<1x8x512xf32, #tpu.memory_space<vmem>>) attributes {dimension_semantics = [#tpu.dimension_semantics<parallel>, #tpu.dimension_semantics<parallel>], iteration_bounds = array<i64: 2, 1>, scalar_prefetch = 0 : i64, scratch_operands = 0 : i64, tpu.core_type = #tpu.core_type<tc>, window_params = [{transform_indices = @transform_0, window_bounds = array<i64: 1, 512, 128>}, {pipeline_mode = #tpu.pipeline_mode<synchronous>, transform_indices = @transform_1, window_bounds = array<i64: 128, 128>}, {pipeline_mode = #tpu.pipeline_mode<synchronous>, transform_indices = @transform_2, window_bounds = array<i64: 8, 128>}, {pipeline_mode = #tpu.pipeline_mode<synchronous>, transform_indices = @transform_3, window_bounds = array<i64: 8, 1>}, {transform_indices = @transform_4, window_bounds = array<i64: 1, 8, 512>}]} {
    %c0 = arith.constant 0 : index
    %c0_0 = arith.constant 0 : index
    %c0_1 = arith.constant 0 : index
    %0 = vector.load %arg2[%c0, %c0_0, %c0_1] : memref<1x512x128xbf16, #tpu.memory_space<vmem>>, vector<1x512x128xbf16>
    %1 = vector.shape_cast %0 : vector<1x512x128xbf16> to vector<512x128xbf16>
    %c0_2 = arith.constant 0 : index
    %c0_3 = arith.constant 0 : index
    %2 = vector.load %arg3[%c0_2, %c0_3] : memref<128x128xbf16, #tpu.memory_space<vmem>>, vector<128x128xbf16>
    %cst = arith.constant dense<0.000000e+00> : vector<512x128xf32>
    %3 = tpu.matmul %1, %2, %cst {dimension_numbers = #tpu.dot_dimension_numbers<[1], [0], [0], [1], [0, 0, 1, 1], [], []>} : vector<512x128xbf16>, vector<128x128xbf16>, vector<512x128xf32> -> vector<512x128xf32>
    %c16_i32 = arith.constant 16 : i32
    %4 = tpu.dynamic_rotate %3 by %c16_i32 dim 1 : vector<512x128xf32>, i32 -> vector<512x128xf32>
    %5 = arith.maximumf %3, %4 : vector<512x128xf32>
    %c32_i32 = arith.constant 32 : i32
    %6 = tpu.dynamic_rotate %5 by %c32_i32 dim 1 : vector<512x128xf32>, i32 -> vector<512x128xf32>
    %7 = arith.maximumf %5, %6 : vector<512x128xf32>
    %c64_i32 = arith.constant 64 : i32
    %8 = tpu.dynamic_rotate %7 by %c64_i32 dim 1 : vector<512x128xf32>, i32 -> vector<512x128xf32>
    %9 = arith.maximumf %7, %8 : vector<512x128xf32>
    %10 = arith.subf %3, %9 : vector<512x128xf32>
    %11 = math.exp %10 : vector<512x128xf32>
    %c16_i32_4 = arith.constant 16 : i32
    %12 = tpu.dynamic_rotate %11 by %c16_i32_4 dim 1 : vector<512x128xf32>, i32 -> vector<512x128xf32>
    %13 = arith.addf %11, %12 : vector<512x128xf32>
    %c32_i32_5 = arith.constant 32 : i32
    %14 = tpu.dynamic_rotate %13 by %c32_i32_5 dim 1 : vector<512x128xf32>, i32 -> vector<512x128xf32>
    %15 = arith.addf %13, %14 : vector<512x128xf32>
    %c64_i32_6 = arith.constant 64 : i32
    %16 = tpu.dynamic_rotate %15 by %c64_i32_6 dim 1 : vector<512x128xf32>, i32 -> vector<512x128xf32>
    %17 = arith.addf %15, %16 : vector<512x128xf32>
    %18 = arith.extf %1 : vector<512x128xbf16> to vector<512x128xf32>
    %19 = tpu.reciprocal %17 {approx = true} : vector<512x128xf32> -> vector<512x128xf32>
    %20 = arith.mulf %11, %19 : vector<512x128xf32>
    %21 = arith.mulf %18, %20 : vector<512x128xf32>
    %c0_7 = arith.constant 0 : index
    %c0_8 = arith.constant 0 : index
    %22 = vector.load %arg4[%c0_7, %c0_8] : memref<8x128xf32, #tpu.memory_space<vmem>>, vector<8x128xf32>
    %cst_9 = arith.constant dense<0.000000e+00> : vector<8x512xf32>
    %23 = tpu.matmul %22, %21, %cst_9 {dimension_numbers = #tpu.dot_dimension_numbers<[1], [1], [0], [0], [0, 0, 1, 0], [], []>} : vector<8x128xf32>, vector<512x128xf32>, vector<8x512xf32> -> vector<8x512xf32>
    %c0_10 = arith.constant 0 : index
    %c0_11 = arith.constant 0 : index
    %24 = vector.load %arg5[%c0_10, %c0_11] : memref<8x1xf32, #tpu.memory_space<vmem>>, vector<8x1xf32>
    %25 = vector.broadcast %24 : vector<8x1xf32> to vector<8x512xf32>
    %26 = arith.addf %23, %25 : vector<8x512xf32>
    %cst_12 = arith.constant 0.000000e+00 : f32
    %27 = vector.broadcast %cst_12 : f32 to vector<8x512xf32>
    %28 = arith.cmpf oge, %26, %27 : vector<8x512xf32>
    %cst_13 = arith.constant 2.000000e-01 : f32
    %29 = vector.broadcast %cst_13 : f32 to vector<8x512xf32>
    %30 = arith.mulf %29, %26 : vector<8x512xf32>
    %31 = arith.select %28, %26, %30 : vector<8x512xi1>, vector<8x512xf32>
    %c0_14 = arith.constant 0 : index
    %c0_15 = arith.constant 0 : index
    %c0_16 = arith.constant 0 : index
    %32 = vector.load %arg6[%c0_14, %c0_15, %c0_16] : memref<1x8x512xf32, #tpu.memory_space<vmem>>, vector<1x8x512xf32>
    %33 = vector.shape_cast %32 : vector<1x8x512xf32> to vector<8x512xf32>
    %34 = vector.shape_cast %31 : vector<8x512xf32> to vector<1x8x512xf32>
    tpu.vector_store %arg6[%c0_14, %c0_15, %c0_16], %34 {strides = array<i32>} : memref<1x8x512xf32, #tpu.memory_space<vmem>>, vector<1x8x512xf32>,
    return
  }
  func.func @transform_0(%arg0: i32, %arg1: i32) -> (i32, i32, i32) {
    %c0_i32 = arith.constant 0 : i32
    %c0_i32_0 = arith.constant 0 : i32
    return %arg0, %arg1, %c0_i32 : i32, i32, i32
  }
  func.func @transform_1(%arg0: i32, %arg1: i32) -> (i32, i32) {
    %c0_i32 = arith.constant 0 : i32
    %c0_i32_0 = arith.constant 0 : i32
    %c0_i32_1 = arith.constant 0 : i32
    return %c0_i32, %c0_i32_0 : i32, i32
  }
  func.func @transform_2(%arg0: i32, %arg1: i32) -> (i32, i32) {
    %c0_i32 = arith.constant 0 : i32
    %c0_i32_0 = arith.constant 0 : i32
    %c0_i32_1 = arith.constant 0 : i32
    return %c0_i32, %c0_i32_0 : i32, i32
  }
  func.func @transform_3(%arg0: i32, %arg1: i32) -> (i32, i32) {
    %c0_i32 = arith.constant 0 : i32
    %c0_i32_0 = arith.constant 0 : i32
    %c0_i32_1 = arith.constant 0 : i32
    return %c0_i32, %c0_i32_0 : i32, i32
  }
  func.func @transform_4(%arg0: i32, %arg1: i32) -> (i32, i32, i32) {
    %c0_i32 = arith.constant 0 : i32
    %c0_i32_0 = arith.constant 0 : i32
    return %arg0, %c0_i32, %arg1 : i32, i32, i32
  }
}

</mosaic_0001>

<llo_original>
// kernel: tpu_custom_call.1
$region0: #{tpu_custom_call.1}
  #allocation0 [shape = 'u32[]', space=smem, size = 0x4, offset = 0x4, fixed_abs, tag = 'smem constant byte address 0x4 - core index']
  #allocation1 [shape = 'u32[144,128]{1,0:T(1,128)}', space=vmem, size = 0x12000, scoped, tag = 'internal scratch']
  %s0 = inlined_call_operand.hbm [shape: bf16[2,512,128], index: 0, kind: input, shape index: {}]
  %s1 = inlined_call_operand.hbm [shape: bf16[128,128], index: 1, kind: input, shape index: {}]
  %s2 = inlined_call_operand.vmem [shape: f32[8,128], index: 2, kind: input, shape index: {}]
  %s3 = inlined_call_operand.vmem [shape: f32[8,1], index: 3, kind: input, shape index: {}]
  %s4 = inlined_call_operand.hbm [shape: f32[2,8,512], index: 4, kind: output, shape index: {}]
  %s5 = sld [smem:[#allocation0]]
  $region57: #{tpu_custom_call.1} parent=0
    _
  %s7 = ssub.s32 1, %s5
  %s8 = scalar_select 0, %s7, %s5
  $region1: #{tpu_custom_call.1} parent=0
    #allocation2 [shape = 'u8[262144]{0}', space=vmem, size = 0x40000, scoped, tag = 'input window, operand 0']
    #allocation3 [shape = 's32[2]{0}', space=sflag, size = 0x8, scoped, tag = 'scoped memory for tpu_custom_call.1']
    #allocation4 [shape = 's32[2]{0}', space=sflag, size = 0x8, scoped, tag = 'scoped memory for tpu_custom_call.1']
    #allocation5 [shape = 'u8[32768]{0}', space=vmem, size = 0x8000, scoped, tag = 'input window, operand 1, single buffered']
    #allocation6 [shape = 's32[1]{0}', space=sflag, size = 0x4, scoped, tag = 'scoped memory for tpu_custom_call.1']
    #allocation7 [shape = 'u8[32768]{0}', space=vmem, size = 0x8000, scoped, tag = 'output window, operand 0']
    %9 = vsyncpa [#allocation3], 0
    %s10 = scalar_lea.sflag [#allocation3], 1
    %11 = vsyncpa %s10, 0
    %12 = vsyncpa [#allocation6], 0
    %13 = vsyncpa [#allocation4], 0
    %s14 = scalar_lea.sflag [#allocation4], 1
    %15 = vsyncpa %s14, 0
    loop: start=0, step=1, limit=4
    $region2: #{tpu_custom_call.1} parent=1 // loop_pre_header
      _
    $region3: #{tpu_custom_call.1} parent=1 // loop_header
      %s17 = sphi 0, %s21
      %p18 = scmp.ge.s32.totalorder %s17, 4
      %s24 = sphi 0, %s36
      %s25 = sphi 0, %s32
      %s26 = sphi 0, %s24
      %s27 = sphi 0, %s25
      %s28 = sphi 0, %s26
      %s29 = sphi 0, %s27
      %s41 = sphi 0, %s43
      %s44 = sphi 0, %s41
      %s45 = sphi 0, %s44
      %s61 = sphi 0, %s45
      %s65 = sphi 0, %s65
      %s67 = sphi 0, %s65
      %s68 = sphi 0, %s67
      %s82 = sphi 0, %s68
      %s86 = sphi 0, %s86
      %s88 = sphi 0, %s86
      %s89 = sphi 0, %s88
      %s103 = sphi 0, %s89
      %s107 = sphi 0, %s107
      %s109 = sphi 0, %s107
      %s110 = sphi 0, %s109
      %s124 = sphi 0, %s110
      %s132 = sphi 0, %s134
      %s135 = sphi 0, %s132
      %s136 = sphi 0, %s135
      %s152 = sphi 0, %s136
    $region4: #{tpu_custom_call.1} parent=1 // loop_header_branch
      %20 = sbr.rel (%p18) target = $region8
    $region5: #{tpu_custom_call.1} parent=1 // loop_body
      %s22 = ssub.s32 %s17, 1
      %s23 = ssub.s32 %s17, 2
      %s30 = sadd.s32 1, %s25
      %p31 = scmp.ge.s32.totalorder %s30, 1
      %s32 = scalar_select %p31, 0, %s30
      %s33 = sadd.s32 1, %s24
      %s34 = scalar_select %p31, %s33, %s24
      %p35 = scmp.ge.s32.totalorder %s34, 2
      %s36 = scalar_select %p35, 0, %s34
      %s37 = ssub.s32 %s24, %s36
      %s38 = ssub.s32 %s25, %s32
      %s39 = sor.u32 %s37, %s38
      %p40 = scmp.eq.s32.totalorder %s39, 0
      %s42 = sadd.s32 %s41, 1
      %s43 = scalar_select %p40, %s41, %s42
      %p46 = pneg %p40
      %p47 = scmp.eq.s32.totalorder %s17, 1
      %p48 = por %p46, %p47
      %p49 = scmp.ne.s32.totalorder %s41, %s44
      %p50 = scmp.eq.s32.totalorder %s17, 0
      %p51 = por %p49, %p50
      %p52 = scmp.ne.s32.totalorder %s41, %s44
      %p53 = scmp.eq.s32.totalorder %s22, 1
      %p54 = por %p52, %p53
      %p55 = scmp.ne.s32.totalorder %s44, %s45
      %p56 = scmp.eq.s32.totalorder %s22, 0
      %p57 = por %p55, %p56
      %p58 = scmp.ne.s32.totalorder %s44, %s45
      %p59 = scmp.eq.s32.totalorder %s23, 1
      %p60 = por %p58, %p59
      %p62 = scmp.ne.s32.totalorder %s45, %s61
      %p63 = scmp.eq.s32.totalorder %s23, 0
      %p64 = por %p62, %p63
      %s66 = sadd.s32 %s65, 1
      %p69 = scmp.eq.s32.totalorder %s17, 1
      %p70 = scmp.ne.s32.totalorder %s65, %s67
      %p71 = scmp.eq.s32.totalorder %s17, 0
      %p72 = por %p70, %p71
      %p73 = scmp.ne.s32.totalorder %s65, %s67
      %p74 = scmp.eq.s32.totalorder %s22, 1
      %p75 = por %p73, %p74
      %p76 = scmp.ne.s32.totalorder %s67, %s68
      %p77 = scmp.eq.s32.totalorder %s22, 0
      %p78 = por %p76, %p77
      %p79 = scmp.ne.s32.totalorder %s67, %s68
      %p80 = scmp.eq.s32.totalorder %s23, 1
      %p81 = por %p79, %p80
      %p83 = scmp.ne.s32.totalorder %s68, %s82
      %p84 = scmp.eq.s32.totalorder %s23, 0
      %p85 = por %p83, %p84
      %s87 = sadd.s32 %s86, 1
      %p90 = scmp.eq.s32.totalorder %s17, 1
      %p91 = scmp.ne.s32.totalorder %s86, %s88
      %p92 = scmp.eq.s32.totalorder %s17, 0
      %p93 = por %p91, %p92
      %p94 = scmp.ne.s32.totalorder %s86, %s88
      %p95 = scmp.eq.s32.totalorder %s22, 1
      %p96 = por %p94, %p95
      %p97 = scmp.ne.s32.totalorder %s88, %s89
      %p98 = scmp.eq.s32.totalorder %s22, 0
      %p99 = por %p97, %p98
      %p100 = scmp.ne.s32.totalorder %s88, %s89
      %p101 = scmp.eq.s32.totalorder %s23, 1
      %p102 = por %p100, %p101
      %p104 = scmp.ne.s32.totalorder %s89, %s103
      %p105 = scmp.eq.s32.totalorder %s23, 0
      %p106 = por %p104, %p105
      %s108 = sadd.s32 %s107, 1
      %p111 = scmp.eq.s32.totalorder %s17, 1
      %p112 = scmp.ne.s32.totalorder %s107, %s109
      %p113 = scmp.eq.s32.totalorder %s17, 0
      %p114 = por %p112, %p113
      %p115 = scmp.ne.s32.totalorder %s107, %s109
      %p116 = scmp.eq.s32.totalorder %s22, 1
      %p117 = por %p115, %p116
      %p118 = scmp.ne.s32.totalorder %s109, %s110
      %p119 = scmp.eq.s32.totalorder %s22, 0
      %p120 = por %p118, %p119
      %p121 = scmp.ne.s32.totalorder %s109, %s110
      %p122 = scmp.eq.s32.totalorder %s23, 1
      %p123 = por %p121, %p122
      %p125 = scmp.ne.s32.totalorder %s110, %s124
      %p126 = scmp.eq.s32.totalorder %s23, 0
      %p127 = por %p125, %p126
      %s128 = ssub.s32 %s24, %s36
      %s129 = ssub.s32 %s25, %s32
      %s130 = sor.u32 %s128, %s129
      %p131 = scmp.eq.s32.totalorder %s130, 0
      %s133 = sadd.s32 %s132, 1
      %s134 = scalar_select %p131, %s132, %s133
      %p137 = pneg %p131
      %p138 = scmp.eq.s32.totalorder %s17, 1
      %p139 = por %p137, %p138
      %p140 = scmp.ne.s32.totalorder %s132, %s135
      %p141 = scmp.eq.s32.totalorder %s17, 0
      %p142 = por %p140, %p141
      %p143 = scmp.ne.s32.totalorder %s132, %s135
      %p144 = scmp.eq.s32.totalorder %s22, 1
      %p145 = por %p143, %p144
      %p146 = scmp.ne.s32.totalorder %s135, %s136
      %p147 = scmp.eq.s32.totalorder %s22, 0
      %p148 = por %p146, %p147
      %p149 = scmp.ne.s32.totalorder %s135, %s136
      %p150 = scmp.eq.s32.totalorder %s23, 1
      %p151 = por %p149, %p150
      %p153 = scmp.ne.s32.totalorder %s136, %s152
      %p154 = scmp.eq.s32.totalorder %s23, 0
      %p155 = por %p153, %p154
      %p156 = scmp.le.s32.totalorder 1, %s17
      %p157 = scmp.lt.s32.totalorder %s17, 3
      %p158 = pnand %p156, %p157
      %p159 = pneg %p158
      // Predicated region
      $region9: #{tpu_custom_call.1} parent=5 // pred_check
        _
      $region10: #{tpu_custom_call.1} parent=5 // pred_check_branch
        %161 = sbr.rel (%p158) target = $region12
      $region11: #{tpu_custom_call.1} parent=5 // pred_region
        %s162 = ssub.s32 %s17, 1
        // Predicated region
        $region13: #{tpu_custom_call.1} parent=11 // pred_check
          %p163 = pneg %p78
        $region14: #{tpu_custom_call.1} parent=11 // pred_check_branch
          %165 = sbr.rel (%p163) target = $region16
        $region15: #{tpu_custom_call.1} parent=11 // pred_region
          %s167 = ssub.s32 1024, 1024
          %168 = vsyncadd [#allocation6], %s167
          %s169 = sshll.u32 [#allocation5], 4
          %s170 = int_to_ptr.vmem [resolvable:$true] %s169
          %175 = dma.hbm_to_vmem [thread:$0]  %s1, 1024, %s170, [#allocation6], 64, 64, 4
        $region16: #{tpu_custom_call.1} parent=11 // pred_fallthru
          _
        // Predicated region
        $region17: #{tpu_custom_call.1} parent=11 // pred_check
          %p176 = pneg %p99
        $region18: #{tpu_custom_call.1} parent=11 // pred_check_branch
          %178 = sbr.rel (%p176) target = $region20
        $region19: #{tpu_custom_call.1} parent=11 // pred_region
          _
        $region20: #{tpu_custom_call.1} parent=11 // pred_fallthru
          _
        // Predicated region
        $region21: #{tpu_custom_call.1} parent=11 // pred_check
          %p179 = pneg %p120
        $region22: #{tpu_custom_call.1} parent=11 // pred_check_branch
          %181 = sbr.rel (%p179) target = $region24
        $region23: #{tpu_custom_call.1} parent=11 // pred_region
          _
        $region24: #{tpu_custom_call.1} parent=11 // pred_fallthru
          _
      $region12: #{tpu_custom_call.1} parent=5 // pred_fallthru
        _
      %p182 = scmp.lt.s32.totalorder %s17, 2
      // Predicated region
      $region25: #{tpu_custom_call.1} parent=5 // pred_check
        %p183 = pneg %p182
      $region26: #{tpu_custom_call.1} parent=5 // pred_check_branch
        %185 = sbr.rel (%p183) target = $region28
      $region27: #{tpu_custom_call.1} parent=5 // pred_region
        // Predicated region
        $region29: #{tpu_custom_call.1} parent=27 // pred_check
          %p186 = pneg %p51
        $region30: #{tpu_custom_call.1} parent=27 // pred_check_branch
          %188 = sbr.rel (%p186) target = $region32
        $region31: #{tpu_custom_call.1} parent=27 // pred_region
          %s189 = sand.u32 %s41, 1
          %s190 = scalar_lea.sflag [#allocation3], %s189
          %s191 = sand.u32 %s41, 1
          %s192 = smul.addr %s191, 256
          %s193 = scalar_lea.vmem [#allocation2], %s192
          %s194 = smul.u32 64, %s25
          %s196 = ssub.s32 4096, 4096
          %197 = vsyncadd %s190, %s196
          %s198 = smul.addr %s24, 64
          %s199 = sadd.s32 %s194, %s198
          %s200 = smul.addr %s199, 64
          %s201 = scalar_lea.hbm %s0, %s200
          %s202 = sshll.u32 %s193, 4
          %s203 = int_to_ptr.vmem [resolvable:$true] %s202
          %208 = dma.hbm_to_vmem [thread:$0]  %s201, 4096, %s203, %s190, 64, 64, 4
        $region32: #{tpu_custom_call.1} parent=27 // pred_fallthru
          _
      $region28: #{tpu_custom_call.1} parent=5 // pred_fallthru
        _
      %p209 = scmp.le.s32.totalorder 1, %s17
      %p210 = scmp.lt.s32.totalorder %s17, 3
      %p211 = pnand %p209, %p210
      %p212 = pneg %p211
      // Predicated region
      $region33: #{tpu_custom_call.1} parent=5 // pred_check
        _
      $region34: #{tpu_custom_call.1} parent=5 // pred_check_branch
        %214 = sbr.rel (%p211) target = $region36
      $region35: #{tpu_custom_call.1} parent=5 // pred_region
        %s215 = ssub.s32 %s17, 1
        %s216 = sand.u32 %s44, 1
        %s217 = scalar_lea.sflag [#allocation3], %s216
        %s218 = sand.u32 %s44, 1
        %s219 = smul.addr %s218, 256
        %s220 = scalar_lea.vmem [#allocation2], %s219
        // Predicated region
        $region37: #{tpu_custom_call.1} parent=35 // pred_check
          %p221 = pneg %p57
        $region38: #{tpu_custom_call.1} parent=35 // pred_check_branch
          %223 = sbr.rel (%p221) target = $region40
        $region39: #{tpu_custom_call.1} parent=35 // pred_region
          %224 = dma.done %s217, 4096
        $region40: #{tpu_custom_call.1} parent=35 // pred_fallthru
          _
        // Predicated region
        $region41: #{tpu_custom_call.1} parent=35 // pred_check
          %p225 = pneg %p78
        $region42: #{tpu_custom_call.1} parent=35 // pred_check_branch
          %227 = sbr.rel (%p225) target = $region44
        $region43: #{tpu_custom_call.1} parent=35 // pred_region
          %228 = dma.done [#allocation6], 1024
        $region44: #{tpu_custom_call.1} parent=35 // pred_fallthru
          _
        %s229 = sand.u32 %s44, 1
        %s230 = scalar_lea.sflag [#allocation3], %s229
        %s231 = sand.u32 %s44, 1
        %s232 = smul.addr %s231, 256
        %s233 = scalar_lea.vmem [#allocation2], %s232
        %p234 = pneg %p57
        %p235 = pneg %p54
        %p236 = pneg %p78
        %p237 = pneg %p75
        %p238 = pneg %p99
        %p239 = pneg %p96
        %p240 = pneg %p120
        %p241 = pneg %p117
        %p242 = pneg %p148
        %p243 = pneg %p145
        %s244 = sand.u32 %s135, 1
        %s245 = scalar_lea.sflag [#allocation4], %s244
        %s246 = sand.u32 %s135, 1
        %s247 = smul.addr %s246, 32
        %s248 = scalar_lea.vmem [#allocation7], %s247
        %s249 = smul.u32 64, %s27
        %s250 = smul.u32 4, %s27
        %v252 = vld [vmem:[%s220] sm:$0xf]
        %v253 = vld [vmem:[%s220 + $0x4] sm:$0xf]
        %v254 = vld [vmem:[%s220 + $0x8] sm:$0xf]
        %v255 = vld [vmem:[%s220 + $0xc] sm:$0xf]
        %v256 = vld [vmem:[%s220 + $0x10] sm:$0xf]
        %v257 = vld [vmem:[%s220 + $0x14] sm:$0xf]
        %v258 = vld [vmem:[%s220 + $0x18] sm:$0xf]
        %v259 = vld [vmem:[%s220 + $0x1c] sm:$0xf]
        %v260 = vld [vmem:[%s220 + $0x20] sm:$0xf]
        %v261 = vld [vmem:[%s220 + $0x24] sm:$0xf]
        %v262 = vld [vmem:[%s220 + $0x28] sm:$0xf]
        %v263 = vld [vmem:[%s220 + $0x2c] sm:$0xf]
        %v264 = vld [vmem:[%s220 + $0x30] sm:$0xf]
        %v265 = vld [vmem:[%s220 + $0x34] sm:$0xf]
        %v266 = vld [vmem:[%s220 + $0x38] sm:$0xf]
        %v267 = vld [vmem:[%s220 + $0x3c] sm:$0xf]
        %v268 = vld [vmem:[%s220 + $0x40] sm:$0xf]
        %v269 = vld [vmem:[%s220 + $0x44] sm:$0xf]
        %v270 = vld [vmem:[%s220 + $0x48] sm:$0xf]
        %v271 = vld [vmem:[%s220 + $0x4c] sm:$0xf]
        %v272 = vld [vmem:[%s220 + $0x50] sm:$0xf]
        %v273 = vld [vmem:[%s220 + $0x54] sm:$0xf]
        %v274 = vld [vmem:[%s220 + $0x58] sm:$0xf]
        %v275 = vld [vmem:[%s220 + $0x5c] sm:$0xf]
        %v276 = vld [vmem:[%s220 + $0x60] sm:$0xf]
        %v277 = vld [vmem:[%s220 + $0x64] sm:$0xf]
        %v278 = vld [vmem:[%s220 + $0x68] sm:$0xf]
        %v279 = vld [vmem:[%s220 + $0x6c] sm:$0xf]
        %v280 = vld [vmem:[%s220 + $0x70] sm:$0xf]
        %v281 = vld [vmem:[%s220 + $0x74] sm:$0xf]
        %v282 = vld [vmem:[%s220 + $0x78] sm:$0xf]
        %v283 = vld [vmem:[%s220 + $0x7c] sm:$0xf]
        %v284 = vld [vmem:[%s220 + $0x80] sm:$0xf]
        %v285 = vld [vmem:[%s220 + $0x84] sm:$0xf]
        %v286 = vld [vmem:[%s220 + $0x88] sm:$0xf]
        %v287 = vld [vmem:[%s220 + $0x8c] sm:$0xf]
        %v288 = vld [vmem:[%s220 + $0x90] sm:$0xf]
        %v289 = vld [vmem:[%s220 + $0x94] sm:$0xf]
        %v290 = vld [vmem:[%s220 + $0x98] sm:$0xf]
        %v291 = vld [vmem:[%s220 + $0x9c] sm:$0xf]
        %v292 = vld [vmem:[%s220 + $0xa0] sm:$0xf]
        %v293 = vld [vmem:[%s220 + $0xa4] sm:$0xf]
        %v294 = vld [vmem:[%s220 + $0xa8] sm:$0xf]
        %v295 = vld [vmem:[%s220 + $0xac] sm:$0xf]
        %v296 = vld [vmem:[%s220 + $0xb0] sm:$0xf]
        %v297 = vld [vmem:[%s220 + $0xb4] sm:$0xf]
        %v298 = vld [vmem:[%s220 + $0xb8] sm:$0xf]
        %v299 = vld [vmem:[%s220 + $0xbc] sm:$0xf]
        %v300 = vld [vmem:[%s220 + $0xc0] sm:$0xf]
        %v301 = vld [vmem:[%s220 + $0xc4] sm:$0xf]
        %v302 = vld [vmem:[%s220 + $0xc8] sm:$0xf]
        %v303 = vld [vmem:[%s220 + $0xcc] sm:$0xf]
        %v304 = vld [vmem:[%s220 + $0xd0] sm:$0xf]
        %v305 = vld [vmem:[%s220 + $0xd4] sm:$0xf]
        %v306 = vld [vmem:[%s220 + $0xd8] sm:$0xf]
        %v307 = vld [vmem:[%s220 + $0xdc] sm:$0xf]
        %v308 = vld [vmem:[%s220 + $0xe0] sm:$0xf]
        %v309 = vld [vmem:[%s220 + $0xe4] sm:$0xf]
        %v310 = vld [vmem:[%s220 + $0xe8] sm:$0xf]
        %v311 = vld [vmem:[%s220 + $0xec] sm:$0xf]
        %v312 = vld [vmem:[%s220 + $0xf0] sm:$0xf]
        %v313 = vld [vmem:[%s220 + $0xf4] sm:$0xf]
        %v314 = vld [vmem:[%s220 + $0xf8] sm:$0xf]
        %v315 = vld [vmem:[%s220 + $0xfc] sm:$0xf]
        %v316 = vld [vmem:[#allocation5] sm:$0xf]
        %v317 = vld [vmem:[#allocation5 + $0x4] sm:$0xf]
        %v318 = vld [vmem:[#allocation5 + $0x8] sm:$0xf]
        %v319 = vld [vmem:[#allocation5 + $0xc] sm:$0xf]
        %v320 = vld [vmem:[#allocation5 + $0x10] sm:$0xf]
        %v321 = vld [vmem:[#allocation5 + $0x14] sm:$0xf]
        %v322 = vld [vmem:[#allocation5 + $0x18] sm:$0xf]
        %v323 = vld [vmem:[#allocation5 + $0x1c] sm:$0xf]
        %v324 = vld [vmem:[#allocation5 + $0x20] sm:$0xf]
        %v325 = vld [vmem:[#allocation5 + $0x24] sm:$0xf]
        %v326 = vld [vmem:[#allocation5 + $0x28] sm:$0xf]
        %v327 = vld [vmem:[#allocation5 + $0x2c] sm:$0xf]
        %v328 = vld [vmem:[#allocation5 + $0x30] sm:$0xf]
        %v329 = vld [vmem:[#allocation5 + $0x34] sm:$0xf]
        %v330 = vld [vmem:[#allocation5 + $0x38] sm:$0xf]
        %v331 = vld [vmem:[#allocation5 + $0x3c] sm:$0xf]
        %v396 = vunpack.c.l.b16 %v252
        %v397 = vunpack.c.l.b16 %v253
        %v398 = vunpack.c.l.b16 %v254
        %v399 = vunpack.c.l.b16 %v255
        %v400 = vunpack.c.l.b16 %v256
        %v401 = vunpack.c.l.b16 %v257
        %v402 = vunpack.c.l.b16 %v258
        %v403 = vunpack.c.l.b16 %v259
        %v404 = vunpack.c.l.b16 %v260
        %v405 = vunpack.c.l.b16 %v261
        %v406 = vunpack.c.l.b16 %v262
        %v407 = vunpack.c.l.b16 %v263
        %v408 = vunpack.c.l.b16 %v264
        %v409 = vunpack.c.l.b16 %v265
        %v410 = vunpack.c.l.b16 %v266
        %v411 = vunpack.c.l.b16 %v267
        %v412 = vunpack.c.l.b16 %v268
        %v413 = vunpack.c.l.b16 %v269
        %v414 = vunpack.c.l.b16 %v270
        %v415 = vunpack.c.l.b16 %v271
        %v416 = vunpack.c.l.b16 %v272
        %v417 = vunpack.c.l.b16 %v273
        %v418 = vunpack.c.l.b16 %v274
        %v419 = vunpack.c.l.b16 %v275
        %v420 = vunpack.c.l.b16 %v276
        %v421 = vunpack.c.l.b16 %v277
        %v422 = vunpack.c.l.b16 %v278
        %v423 = vunpack.c.l.b16 %v279
        %v424 = vunpack.c.l.b16 %v280
        %v425 = vunpack.c.l.b16 %v281
        %v426 = vunpack.c.l.b16 %v282
        %v427 = vunpack.c.l.b16 %v283
        %v428 = vunpack.c.l.b16 %v284
        %v429 = vunpack.c.l.b16 %v285
        %v430 = vunpack.c.l.b16 %v286
        %v431 = vunpack.c.l.b16 %v287
        %v432 = vunpack.c.l.b16 %v288
        %v433 = vunpack.c.l.b16 %v289
        %v434 = vunpack.c.l.b16 %v290
        %v435 = vunpack.c.l.b16 %v291
        %v436 = vunpack.c.l.b16 %v292
        %v437 = vunpack.c.l.b16 %v293
        %v438 = vunpack.c.l.b16 %v294
        %v439 = vunpack.c.l.b16 %v295
        %v440 = vunpack.c.l.b16 %v296
        %v441 = vunpack.c.l.b16 %v297
        %v442 = vunpack.c.l.b16 %v298
        %v443 = vunpack.c.l.b16 %v299
        %v444 = vunpack.c.l.b16 %v300
        %v445 = vunpack.c.l.b16 %v301
        %v446 = vunpack.c.l.b16 %v302
        %v447 = vunpack.c.l.b16 %v303
        %v448 = vunpack.c.l.b16 %v304
        %v449 = vunpack.c.l.b16 %v305
        %v450 = vunpack.c.l.b16 %v306
        %v451 = vunpack.c.l.b16 %v307
        %v452 = vunpack.c.l.b16 %v308
        %v453 = vunpack.c.l.b16 %v309
        %v454 = vunpack.c.l.b16 %v310
        %v455 = vunpack.c.l.b16 %v311
        %v456 = vunpack.c.l.b16 %v312
        %v457 = vunpack.c.l.b16 %v313
        %v458 = vunpack.c.l.b16 %v314
        %v459 = vunpack.c.l.b16 %v315
        %v460 = vpack.c.b16 %v397, %v396
        %v461 = vpack.c.b16 %v399, %v398
        %v462 = vpack.c.b16 %v401, %v400
        %v463 = vpack.c.b16 %v403, %v402
        %v464 = vpack.c.b16 %v405, %v404
        %v465 = vpack.c.b16 %v407, %v406
        %v466 = vpack.c.b16 %v409, %v408
        %v467 = vpack.c.b16 %v411, %v410
        %v468 = vpack.c.b16 %v413, %v412
        %v469 = vpack.c.b16 %v415, %v414
        %v470 = vpack.c.b16 %v417, %v416
        %v471 = vpack.c.b16 %v419, %v418
        %v472 = vpack.c.b16 %v421, %v420
        %v473 = vpack.c.b16 %v423, %v422
        %v474 = vpack.c.b16 %v425, %v424
        %v475 = vpack.c.b16 %v427, %v426
        %v476 = vpack.c.b16 %v429, %v428
        %v477 = vpack.c.b16 %v431, %v430
        %v478 = vpack.c.b16 %v433, %v432
        %v479 = vpack.c.b16 %v435, %v434
        %v480 = vpack.c.b16 %v437, %v436
        %v481 = vpack.c.b16 %v439, %v438
        %v482 = vpack.c.b16 %v441, %v440
        %v483 = vpack.c.b16 %v443, %v442
        %v484 = vpack.c.b16 %v445, %v444
        %v485 = vpack.c.b16 %v447, %v446
        %v486 = vpack.c.b16 %v449, %v448
        %v487 = vpack.c.b16 %v451, %v450
        %v488 = vpack.c.b16 %v453, %v452
        %v489 = vpack.c.b16 %v455, %v454
        %v490 = vpack.c.b16 %v457, %v456
        %v491 = vpack.c.b16 %v459, %v458
        %v540 = vunpack.c.l.b16 %v316
        %v541 = vunpack.c.l.b16 %v317
        %v542 = vunpack.c.l.b16 %v318
        %v543 = vunpack.c.l.b16 %v319
        %v544 = vunpack.c.l.b16 %v320
        %v545 = vunpack.c.l.b16 %v321
        %v546 = vunpack.c.l.b16 %v322
        %v547 = vunpack.c.l.b16 %v323
        %v548 = vunpack.c.l.b16 %v324
        %v549 = vunpack.c.l.b16 %v325
        %v550 = vunpack.c.l.b16 %v326
        %v551 = vunpack.c.l.b16 %v327
        %v552 = vunpack.c.l.b16 %v328
        %v553 = vunpack.c.l.b16 %v329
        %v554 = vunpack.c.l.b16 %v330
        %v555 = vunpack.c.l.b16 %v331
        %v556 = vpack.c.b16 %v541, %v540
        %v557 = vpack.c.b16 %v543, %v542
        %v558 = vpack.c.b16 %v545, %v544
        %v559 = vpack.c.b16 %v547, %v546
        %v560 = vpack.c.b16 %v549, %v548
        %v561 = vpack.c.b16 %v551, %v550
        %v562 = vpack.c.b16 %v553, %v552
        %v563 = vpack.c.b16 %v555, %v554
        %572 = vmatprep.subr.bf16.mxu0 0
        %573 = vmatpush1.bf16.msra.mxu0 %v556
        %574 = vmatprep.subr.bf16.mxu0 0
        %575 = vmatpush1.bf16.msra.mxu0 %v557
        %576 = vmatprep.subr.bf16.mxu0 0
        %577 = vmatpush1.bf16.msra.mxu0 %v558
        %578 = vmatprep.subr.bf16.mxu0 0
        %579 = vmatpush1.bf16.msra.mxu0 %v559
        %580 = vmatprep.subr.bf16.mxu0 0
        %581 = vmatpush1.bf16.msra.mxu0 %v560
        %582 = vmatprep.subr.bf16.mxu0 0
        %583 = vmatpush1.bf16.msra.mxu0 %v561
        %584 = vmatprep.subr.bf16.mxu0 0
        %585 = vmatpush1.bf16.msra.mxu0 %v562
        %586 = vmatprep.subr.bf16.mxu0 0
        %587 = vmatpush1.bf16.msra.mxu0 %v563
        %588 = vmatprep.subr.bf16.mxu0 0
        %589 = vmatpush1.bf16.msra.mxu0 0
        %590 = vmatprep.subr.bf16.mxu0 0
        %591 = vmatpush1.bf16.msra.mxu0 0
        %592 = vmatprep.subr.bf16.mxu0 0
        %593 = vmatpush1.bf16.msra.mxu0 0
        %594 = vmatprep.subr.bf16.mxu0 0
        %595 = vmatpush1.bf16.msra.mxu0 0
        %596 = vmatprep.subr.bf16.mxu0 0
        %597 = vmatpush1.bf16.msra.mxu0 0
        %598 = vmatprep.subr.bf16.mxu0 0
        %599 = vmatpush1.bf16.msra.mxu0 0
        %600 = vmatprep.subr.bf16.mxu0 0
        %601 = vmatpush1.bf16.msra.mxu0 0
        %602 = vmatprep.subr.bf16.mxu0 0
        %603 = vmatpush1.bf16.msra.mxu0 0
        %604 = vmatprep.mubr.bf16.mxu0 0
        %605 = vmatmul.mubr.bf16.gmra.mrb[0].mxu0 %v460
        %v606 = vpop.f32.mrb[0].mxu0
        %v607 = vadd.f32 0.0, %v606
        %v608 = vpop.f32.mrb[0].mxu0
        %v609 = vpop.f32.mrb[0].mxu0
        %v610 = vadd.f32 0.0, %v609
        %v611 = vpop.f32.mrb[0].mxu0
        %612 = vmatprep.mubr.bf16.mxu0 0
        %613 = vmatmul.mubr.bf16.gmra.mrb[0].mxu0 %v461
        %v614 = vpop.f32.mrb[0].mxu0
        %v615 = vadd.f32 0.0, %v614
        %v616 = vpop.f32.mrb[0].mxu0
        %v617 = vpop.f32.mrb[0].mxu0
        %v618 = vadd.f32 0.0, %v617
        %v619 = vpop.f32.mrb[0].mxu0
        %620 = vmatprep.mubr.bf16.mxu0 0
        %621 = vmatmul.mubr.bf16.gmra.mrb[0].mxu0 %v462
        %v622 = vpop.f32.mrb[0].mxu0
        %v623 = vadd.f32 0.0, %v622
        %v624 = vpop.f32.mrb[0].mxu0
        %v625 = vpop.f32.mrb[0].mxu0
        %v626 = vadd.f32 0.0, %v625
        %v627 = vpop.f32.mrb[0].mxu0
        %628 = vmatprep.mubr.bf16.mxu0 0
        %629 = vmatmul.mubr.bf16.gmra.mrb[0].mxu0 %v463
        %v630 = vpop.f32.mrb[0].mxu0
        %v631 = vadd.f32 0.0, %v630
        %v632 = vpop.f32.mrb[0].mxu0
        %v633 = vpop.f32.mrb[0].mxu0
        %v634 = vadd.f32 0.0, %v633
        %v635 = vpop.f32.mrb[0].mxu0
        %636 = vmatprep.mubr.bf16.mxu0 0
        %637 = vmatmul.mubr.bf16.gmra.mrb[0].mxu0 %v464
        %v638 = vpop.f32.mrb[0].mxu0
        %v639 = vadd.f32 0.0, %v638
        %v640 = vpop.f32.mrb[0].mxu0
        %v641 = vpop.f32.mrb[0].mxu0
        %v642 = vadd.f32 0.0, %v641
        %v643 = vpop.f32.mrb[0].mxu0
        %644 = vmatprep.mubr.bf16.mxu0 0
        %645 = vmatmul.mubr.bf16.gmra.mrb[0].mxu0 %v465
        %v646 = vpop.f32.mrb[0].mxu0
        %v647 = vadd.f32 0.0, %v646
        %v648 = vpop.f32.mrb[0].mxu0
        %v649 = vpop.f32.mrb[0].mxu0
        %v650 = vadd.f32 0.0, %v649
        %v651 = vpop.f32.mrb[0].mxu0
        %652 = vmatprep.mubr.bf16.mxu0 0
        %653 = vmatmul.mubr.bf16.gmra.mrb[0].mxu0 %v466
        %v654 = vpop.f32.mrb[0].mxu0
        %v655 = vadd.f32 0.0, %v654
        %v656 = vpop.f32.mrb[0].mxu0
        %v657 = vpop.f32.mrb[0].mxu0
        %v658 = vadd.f32 0.0, %v657
        %v659 = vpop.f32.mrb[0].mxu0
        %660 = vmatprep.mubr.bf16.mxu0 0
        %661 = vmatmul.mubr.bf16.gmra.mrb[0].mxu0 %v467
        %v662 = vpop.f32.mrb[0].mxu0
        %v663 = vadd.f32 0.0, %v662
        %v664 = vpop.f32.mrb[0].mxu0
        %v665 = vpop.f32.mrb[0].mxu0
        %v666 = vadd.f32 0.0, %v665
        %v667 = vpop.f32.mrb[0].mxu0
        %668 = vmatprep.mubr.bf16.mxu0 0
        %669 = vmatmul.mubr.bf16.gmra.mrb[0].mxu0 %v468
        %v670 = vpop.f32.mrb[0].mxu0
        %v671 = vadd.f32 0.0, %v670
        %v672 = vpop.f32.mrb[0].mxu0
        %v673 = vpop.f32.mrb[0].mxu0
        %v674 = vadd.f32 0.0, %v673
        %v675 = vpop.f32.mrb[0].mxu0
        %676 = vmatprep.mubr.bf16.mxu0 0
        %677 = vmatmul.mubr.bf16.gmra.mrb[0].mxu0 %v469
        %v678 = vpop.f32.mrb[0].mxu0
        %v679 = vadd.f32 0.0, %v678
        %v680 = vpop.f32.mrb[0].mxu0
        %v681 = vpop.f32.mrb[0].mxu0
        %v682 = vadd.f32 0.0, %v681
        %v683 = vpop.f32.mrb[0].mxu0
        %684 = vmatprep.mubr.bf16.mxu0 0
        %685 = vmatmul.mubr.bf16.gmra.mrb[0].mxu0 %v470
        %v686 = vpop.f32.mrb[0].mxu0
        %v687 = vadd.f32 0.0, %v686
        %v688 = vpop.f32.mrb[0].mxu0
        %v689 = vpop.f32.mrb[0].mxu0
        %v690 = vadd.f32 0.0, %v689
        %v691 = vpop.f32.mrb[0].mxu0
        %692 = vmatprep.mubr.bf16.mxu0 0
        %693 = vmatmul.mubr.bf16.gmra.mrb[0].mxu0 %v471
        %v694 = vpop.f32.mrb[0].mxu0
        %v695 = vadd.f32 0.0, %v694
        %v696 = vpop.f32.mrb[0].mxu0
        %v697 = vpop.f32.mrb[0].mxu0
        %v698 = vadd.f32 0.0, %v697
        %v699 = vpop.f32.mrb[0].mxu0
        %700 = vmatprep.mubr.bf16.mxu0 0
        %701 = vmatmul.mubr.bf16.gmra.mrb[0].mxu0 %v472
        %v702 = vpop.f32.mrb[0].mxu0
        %v703 = vadd.f32 0.0, %v702
        %v704 = vpop.f32.mrb[0].mxu0
        %v705 = vpop.f32.mrb[0].mxu0
        %v706 = vadd.f32 0.0, %v705
        %v707 = vpop.f32.mrb[0].mxu0
        %708 = vmatprep.mubr.bf16.mxu0 0
        %709 = vmatmul.mubr.bf16.gmra.mrb[0].mxu0 %v473
        %v710 = vpop.f32.mrb[0].mxu0
        %v711 = vadd.f32 0.0, %v710
        %v712 = vpop.f32.mrb[0].mxu0
        %v713 = vpop.f32.mrb[0].mxu0
        %v714 = vadd.f32 0.0, %v713
        %v715 = vpop.f32.mrb[0].mxu0
        %716 = vmatprep.mubr.bf16.mxu0 0
        %717 = vmatmul.mubr.bf16.gmra.mrb[0].mxu0 %v474
        %v718 = vpop.f32.mrb[0].mxu0
        %v719 = vadd.f32 0.0, %v718
        %v720 = vpop.f32.mrb[0].mxu0
        %v721 = vpop.f32.mrb[0].mxu0
        %v722 = vadd.f32 0.0, %v721
        %v723 = vpop.f32.mrb[0].mxu0
        %724 = vmatprep.mubr.bf16.mxu0 0
        %725 = vmatmul.mubr.bf16.gmra.mrb[0].mxu0 %v475
        %v726 = vpop.f32.mrb[0].mxu0
        %v727 = vadd.f32 0.0, %v726
        %v728 = vpop.f32.mrb[0].mxu0
        %v729 = vpop.f32.mrb[0].mxu0
        %v730 = vadd.f32 0.0, %v729
        %v731 = vpop.f32.mrb[0].mxu0
        %732 = vmatprep.mubr.bf16.mxu0 0
        %733 = vmatmul.mubr.bf16.gmra.mrb[0].mxu0 %v476
        %v734 = vpop.f32.mrb[0].mxu0
        %v735 = vadd.f32 0.0, %v734
        %v736 = vpop.f32.mrb[0].mxu0
        %v737 = vpop.f32.mrb[0].mxu0
        %v738 = vadd.f32 0.0, %v737
        %v739 = vpop.f32.mrb[0].mxu0
        %740 = vmatprep.mubr.bf16.mxu0 0
        %741 = vmatmul.mubr.bf16.gmra.mrb[0].mxu0 %v477
        %v742 = vpop.f32.mrb[0].mxu0
        %v743 = vadd.f32 0.0, %v742
        %v744 = vpop.f32.mrb[0].mxu0
        %v745 = vpop.f32.mrb[0].mxu0
        %v746 = vadd.f32 0.0, %v745
        %v747 = vpop.f32.mrb[0].mxu0
        %748 = vmatprep.mubr.bf16.mxu0 0
        %749 = vmatmul.mubr.bf16.gmra.mrb[0].mxu0 %v478
        %v750 = vpop.f32.mrb[0].mxu0
        %v751 = vadd.f32 0.0, %v750
        %v752 = vpop.f32.mrb[0].mxu0
        %v753 = vpop.f32.mrb[0].mxu0
        %v754 = vadd.f32 0.0, %v753
        %v755 = vpop.f32.mrb[0].mxu0
        %756 = vmatprep.mubr.bf16.mxu0 0
        %757 = vmatmul.mubr.bf16.gmra.mrb[0].mxu0 %v479
        %v758 = vpop.f32.mrb[0].mxu0
        %v759 = vadd.f32 0.0, %v758
        %v760 = vpop.f32.mrb[0].mxu0
        %v761 = vpop.f32.mrb[0].mxu0
        %v762 = vadd.f32 0.0, %v761
        %v763 = vpop.f32.mrb[0].mxu0
        %764 = vmatprep.mubr.bf16.mxu0 0
        %765 = vmatmul.mubr.bf16.gmra.mrb[0].mxu0 %v480
        %v766 = vpop.f32.mrb[0].mxu0
        %v767 = vadd.f32 0.0, %v766
        %v768 = vpop.f32.mrb[0].mxu0
        %v769 = vpop.f32.mrb[0].mxu0
        %v770 = vadd.f32 0.0, %v769
        %v771 = vpop.f32.mrb[0].mxu0
        %772 = vmatprep.mubr.bf16.mxu0 0
        %773 = vmatmul.mubr.bf16.gmra.mrb[0].mxu0 %v481
        %v774 = vpop.f32.mrb[0].mxu0
        %v775 = vadd.f32 0.0, %v774
        %v776 = vpop.f32.mrb[0].mxu0
        %v777 = vpop.f32.mrb[0].mxu0
        %v778 = vadd.f32 0.0, %v777
        %v779 = vpop.f32.mrb[0].mxu0
        %780 = vmatprep.mubr.bf16.mxu0 0
        %781 = vmatmul.mubr.bf16.gmra.mrb[0].mxu0 %v482
        %v782 = vpop.f32.mrb[0].mxu0
        %v783 = vadd.f32 0.0, %v782
        %v784 = vpop.f32.mrb[0].mxu0
        %v785 = vpop.f32.mrb[0].mxu0
        %v786 = vadd.f32 0.0, %v785
        %v787 = vpop.f32.mrb[0].mxu0
        %788 = vmatprep.mubr.bf16.mxu0 0
        %789 = vmatmul.mubr.bf16.gmra.mrb[0].mxu0 %v483
        %v790 = vpop.f32.mrb[0].mxu0
        %v791 = vadd.f32 0.0, %v790
        %v792 = vpop.f32.mrb[0].mxu0
        %v793 = vpop.f32.mrb[0].mxu0
        %v794 = vadd.f32 0.0, %v793
        %v795 = vpop.f32.mrb[0].mxu0
        %796 = vmatprep.mubr.bf16.mxu0 0
        %797 = vmatmul.mubr.bf16.gmra.mrb[0].mxu0 %v484
        %v798 = vpop.f32.mrb[0].mxu0
        %v799 = vadd.f32 0.0, %v798
        %v800 = vpop.f32.mrb[0].mxu0
        %v801 = vpop.f32.mrb[0].mxu0
        %v802 = vadd.f32 0.0, %v801
        %v803 = vpop.f32.mrb[0].mxu0
        %804 = vmatprep.mubr.bf16.mxu0 0
        %805 = vmatmul.mubr.bf16.gmra.mrb[0].mxu0 %v485
        %v806 = vpop.f32.mrb[0].mxu0
        %v807 = vadd.f32 0.0, %v806
        %v808 = vpop.f32.mrb[0].mxu0
        %v809 = vpop.f32.mrb[0].mxu0
        %v810 = vadd.f32 0.0, %v809
        %v811 = vpop.f32.mrb[0].mxu0
        %812 = vmatprep.mubr.bf16.mxu0 0
        %813 = vmatmul.mubr.bf16.gmra.mrb[0].mxu0 %v486
        %v814 = vpop.f32.mrb[0].mxu0
        %v815 = vadd.f32 0.0, %v814
        %v816 = vpop.f32.mrb[0].mxu0
        %v817 = vpop.f32.mrb[0].mxu0
        %v818 = vadd.f32 0.0, %v817
        %v819 = vpop.f32.mrb[0].mxu0
        %820 = vmatprep.mubr.bf16.mxu0 0
        %821 = vmatmul.mubr.bf16.gmra.mrb[0].mxu0 %v487
        %v822 = vpop.f32.mrb[0].mxu0
        %v823 = vadd.f32 0.0, %v822
        %v824 = vpop.f32.mrb[0].mxu0
        %v825 = vpop.f32.mrb[0].mxu0
        %v826 = vadd.f32 0.0, %v825
        %v827 = vpop.f32.mrb[0].mxu0
        %828 = vmatprep.mubr.bf16.mxu0 0
        %829 = vmatmul.mubr.bf16.gmra.mrb[0].mxu0 %v488
        %v830 = vpop.f32.mrb[0].mxu0
        %v831 = vadd.f32 0.0, %v830
        %v832 = vpop.f32.mrb[0].mxu0
        %v833 = vpop.f32.mrb[0].mxu0
        %v834 = vadd.f32 0.0, %v833
        %v835 = vpop.f32.mrb[0].mxu0
        %836 = vmatprep.mubr.bf16.mxu0 0
        %837 = vmatmul.mubr.bf16.gmra.mrb[0].mxu0 %v489
        %v838 = vpop.f32.mrb[0].mxu0
        %v839 = vadd.f32 0.0, %v838
        %v840 = vpop.f32.mrb[0].mxu0
        %v841 = vpop.f32.mrb[0].mxu0
        %v842 = vadd.f32 0.0, %v841
        %v843 = vpop.f32.mrb[0].mxu0
        %844 = vmatprep.mubr.bf16.mxu0 0
        %845 = vmatmul.mubr.bf16.gmra.mrb[0].mxu0 %v490
        %v846 = vpop.f32.mrb[0].mxu0
        %v847 = vadd.f32 0.0, %v846
        %v848 = vpop.f32.mrb[0].mxu0
        %v849 = vpop.f32.mrb[0].mxu0
        %v850 = vadd.f32 0.0, %v849
        %v851 = vpop.f32.mrb[0].mxu0
        %852 = vmatprep.mubr.bf16.mxu0 0
        %853 = vmatmul.mubr.bf16.gmra.mrb[0].mxu0 %v491
        %v854 = vpop.f32.mrb[0].mxu0
        %v855 = vadd.f32 0.0, %v854
        %v856 = vpop.f32.mrb[0].mxu0
        %v857 = vpop.f32.mrb[0].mxu0
        %v858 = vadd.f32 0.0, %v857
        %v859 = vpop.f32.mrb[0].mxu0
        %860 = vdwg.mxu0
        %861 = vrot.lane.b32.xlu0 %v607, 16
        %v862 = vpop.permute.xlu0 %861
        %863 = vrot.lane.b32.xlu0 %v610, 16
        %v864 = vpop.permute.xlu0 %863
        %865 = vrot.lane.b32.xlu0 %v615, 16
        %v866 = vpop.permute.xlu0 %865
        %867 = vrot.lane.b32.xlu0 %v618, 16
        %v868 = vpop.permute.xlu0 %867
        %869 = vrot.lane.b32.xlu0 %v623, 16
        %v870 = vpop.permute.xlu0 %869
        %871 = vrot.lane.b32.xlu0 %v626, 16
        %v872 = vpop.permute.xlu0 %871
        %873 = vrot.lane.b32.xlu0 %v631, 16
        %v874 = vpop.permute.xlu0 %873
        %875 = vrot.lane.b32.xlu0 %v634, 16
        %v876 = vpop.permute.xlu0 %875
        %877 = vrot.lane.b32.xlu0 %v639, 16
        %v878 = vpop.permute.xlu0 %877
        %879 = vrot.lane.b32.xlu0 %v642, 16
        %v880 = vpop.permute.xlu0 %879
        %881 = vrot.lane.b32.xlu0 %v647, 16
        %v882 = vpop.permute.xlu0 %881
        %883 = vrot.lane.b32.xlu0 %v650, 16
        %v884 = vpop.permute.xlu0 %883
        %885 = vrot.lane.b32.xlu0 %v655, 16
        %v886 = vpop.permute.xlu0 %885
        %887 = vrot.lane.b32.xlu0 %v658, 16
        %v888 = vpop.permute.xlu0 %887
        %889 = vrot.lane.b32.xlu0 %v663, 16
        %v890 = vpop.permute.xlu0 %889
        %891 = vrot.lane.b32.xlu0 %v666, 16
        %v892 = vpop.permute.xlu0 %891
        %893 = vrot.lane.b32.xlu0 %v671, 16
        %v894 = vpop.permute.xlu0 %893
        %895 = vrot.lane.b32.xlu0 %v674, 16
        %v896 = vpop.permute.xlu0 %895
        %897 = vrot.lane.b32.xlu0 %v679, 16
        %v898 = vpop.permute.xlu0 %897
        %899 = vrot.lane.b32.xlu0 %v682, 16
        %v900 = vpop.permute.xlu0 %899
        %901 = vrot.lane.b32.xlu0 %v687, 16
        %v902 = vpop.permute.xlu0 %901
        %903 = vrot.lane.b32.xlu0 %v690, 16
        %v904 = vpop.permute.xlu0 %903
        %905 = vrot.lane.b32.xlu0 %v695, 16
        %v906 = vpop.permute.xlu0 %905
        %907 = vrot.lane.b32.xlu0 %v698, 16
        %v908 = vpop.permute.xlu0 %907
        %909 = vrot.lane.b32.xlu0 %v703, 16
        %v910 = vpop.permute.xlu0 %909
        %911 = vrot.lane.b32.xlu0 %v706, 16
        %v912 = vpop.permute.xlu0 %911
        %913 = vrot.lane.b32.xlu0 %v711, 16
        %v914 = vpop.permute.xlu0 %913
        %915 = vrot.lane.b32.xlu0 %v714, 16
        %v916 = vpop.permute.xlu0 %915
        %917 = vrot.lane.b32.xlu0 %v719, 16
        %v918 = vpop.permute.xlu0 %917
        %919 = vrot.lane.b32.xlu0 %v722, 16
        %v920 = vpop.permute.xlu0 %919
        %921 = vrot.lane.b32.xlu0 %v727, 16
        %v922 = vpop.permute.xlu0 %921
        %923 = vrot.lane.b32.xlu0 %v730, 16
        %v924 = vpop.permute.xlu0 %923
        %925 = vrot.lane.b32.xlu0 %v735, 16
        %v926 = vpop.permute.xlu0 %925
        %927 = vrot.lane.b32.xlu0 %v738, 16
        %v928 = vpop.permute.xlu0 %927
        %929 = vrot.lane.b32.xlu0 %v743, 16
        %v930 = vpop.permute.xlu0 %929
        %931 = vrot.lane.b32.xlu0 %v746, 16
        %v932 = vpop.permute.xlu0 %931
        %933 = vrot.lane.b32.xlu0 %v751, 16
        %v934 = vpop.permute.xlu0 %933
        %935 = vrot.lane.b32.xlu0 %v754, 16
        %v936 = vpop.permute.xlu0 %935
        %937 = vrot.lane.b32.xlu0 %v759, 16
        %v938 = vpop.permute.xlu0 %937
        %939 = vrot.lane.b32.xlu0 %v762, 16
        %v940 = vpop.permute.xlu0 %939
        %941 = vrot.lane.b32.xlu0 %v767, 16
        %v942 = vpop.permute.xlu0 %941
        %943 = vrot.lane.b32.xlu0 %v770, 16
        %v944 = vpop.permute.xlu0 %943
        %945 = vrot.lane.b32.xlu0 %v775, 16
        %v946 = vpop.permute.xlu0 %945
        %947 = vrot.lane.b32.xlu0 %v778, 16
        %v948 = vpop.permute.xlu0 %947
        %949 = vrot.lane.b32.xlu0 %v783, 16
        %v950 = vpop.permute.xlu0 %949
        %951 = vrot.lane.b32.xlu0 %v786, 16
        %v952 = vpop.permute.xlu0 %951
        %953 = vrot.lane.b32.xlu0 %v791, 16
        %v954 = vpop.permute.xlu0 %953
        %955 = vrot.lane.b32.xlu0 %v794, 16
        %v956 = vpop.permute.xlu0 %955
        %957 = vrot.lane.b32.xlu0 %v799, 16
        %v958 = vpop.permute.xlu0 %957
        %959 = vrot.lane.b32.xlu0 %v802, 16
        %v960 = vpop.permute.xlu0 %959
        %961 = vrot.lane.b32.xlu0 %v807, 16
        %v962 = vpop.permute.xlu0 %961
        %963 = vrot.lane.b32.xlu0 %v810, 16
        %v964 = vpop.permute.xlu0 %963
        %965 = vrot.lane.b32.xlu0 %v815, 16
        %v966 = vpop.permute.xlu0 %965
        %967 = vrot.lane.b32.xlu0 %v818, 16
        %v968 = vpop.permute.xlu0 %967
        %969 = vrot.lane.b32.xlu0 %v823, 16
        %v970 = vpop.permute.xlu0 %969
        %971 = vrot.lane.b32.xlu0 %v826, 16
        %v972 = vpop.permute.xlu0 %971
        %973 = vrot.lane.b32.xlu0 %v831, 16
        %v974 = vpop.permute.xlu0 %973
        %975 = vrot.lane.b32.xlu0 %v834, 16
        %v976 = vpop.permute.xlu0 %975
        %977 = vrot.lane.b32.xlu0 %v839, 16
        %v978 = vpop.permute.xlu0 %977
        %979 = vrot.lane.b32.xlu0 %v842, 16
        %v980 = vpop.permute.xlu0 %979
        %981 = vrot.lane.b32.xlu0 %v847, 16
        %v982 = vpop.permute.xlu0 %981
        %983 = vrot.lane.b32.xlu0 %v850, 16
        %v984 = vpop.permute.xlu0 %983
        %985 = vrot.lane.b32.xlu0 %v855, 16
        %v986 = vpop.permute.xlu0 %985
        %987 = vrot.lane.b32.xlu0 %v858, 16
        %v988 = vpop.permute.xlu0 %987
        %v989 = vmax.f32 %v607, %v862
        %v990 = vmax.f32 %v610, %v864
        %v991 = vmax.f32 %v615, %v866
        %v992 = vmax.f32 %v618, %v868
        %v993 = vmax.f32 %v623, %v870
        %v994 = vmax.f32 %v626, %v872
        %v995 = vmax.f32 %v631, %v874
        %v996 = vmax.f32 %v634, %v876
        %v997 = vmax.f32 %v639, %v878
        %v998 = vmax.f32 %v642, %v880
        %v999 = vmax.f32 %v647, %v882
        %v1000 = vmax.f32 %v650, %v884
        %v1001 = vmax.f32 %v655, %v886
        %v1002 = vmax.f32 %v658, %v888
        %v1003 = vmax.f32 %v663, %v890
        %v1004 = vmax.f32 %v666, %v892
        %v1005 = vmax.f32 %v671, %v894
        %v1006 = vmax.f32 %v674, %v896
        %v1007 = vmax.f32 %v679, %v898
        %v1008 = vmax.f32 %v682, %v900
        %v1009 = vmax.f32 %v687, %v902
        %v1010 = vmax.f32 %v690, %v904
        %v1011 = vmax.f32 %v695, %v906
        %v1012 = vmax.f32 %v698, %v908
        %v1013 = vmax.f32 %v703, %v910
        %v1014 = vmax.f32 %v706, %v912
        %v1015 = vmax.f32 %v711, %v914
        %v1016 = vmax.f32 %v714, %v916
        %v1017 = vmax.f32 %v719, %v918
        %v1018 = vmax.f32 %v722, %v920
        %v1019 = vmax.f32 %v727, %v922
        %v1020 = vmax.f32 %v730, %v924
        %v1021 = vmax.f32 %v735, %v926
        %v1022 = vmax.f32 %v738, %v928
        %v1023 = vmax.f32 %v743, %v930
        %v1024 = vmax.f32 %v746, %v932
        %v1025 = vmax.f32 %v751, %v934
        %v1026 = vmax.f32 %v754, %v936
        %v1027 = vmax.f32 %v759, %v938
        %v1028 = vmax.f32 %v762, %v940
        %v1029 = vmax.f32 %v767, %v942
        %v1030 = vmax.f32 %v770, %v944
        %v1031 = vmax.f32 %v775, %v946
        %v1032 = vmax.f32 %v778, %v948
        %v1033 = vmax.f32 %v783, %v950
        %v1034 = vmax.f32 %v786, %v952
        %v1035 = vmax.f32 %v791, %v954
        %v1036 = vmax.f32 %v794, %v956
        %v1037 = vmax.f32 %v799, %v958
        %v1038 = vmax.f32 %v802, %v960
        %v1039 = vmax.f32 %v807, %v962
        %v1040 = vmax.f32 %v810, %v964
        %v1041 = vmax.f32 %v815, %v966
        %v1042 = vmax.f32 %v818, %v968
        %v1043 = vmax.f32 %v823, %v970
        %v1044 = vmax.f32 %v826, %v972
        %v1045 = vmax.f32 %v831, %v974
        %v1046 = vmax.f32 %v834, %v976
        %v1047 = vmax.f32 %v839, %v978
        %v1048 = vmax.f32 %v842, %v980
        %v1049 = vmax.f32 %v847, %v982
        %v1050 = vmax.f32 %v850, %v984
        %v1051 = vmax.f32 %v855, %v986
        %v1052 = vmax.f32 %v858, %v988
        %1053 = vrot.lane.b32.xlu0 %v989, 32
        %v1054 = vpop.permute.xlu0 %1053
        %1055 = vrot.lane.b32.xlu0 %v990, 32
        %v1056 = vpop.permute.xlu0 %1055
        %1057 = vrot.lane.b32.xlu0 %v991, 32
        %v1058 = vpop.permute.xlu0 %1057
        %1059 = vrot.lane.b32.xlu0 %v992, 32
        %v1060 = vpop.permute.xlu0 %1059
        %1061 = vrot.lane.b32.xlu0 %v993, 32
        %v1062 = vpop.permute.xlu0 %1061
        %1063 = vrot.lane.b32.xlu0 %v994, 32
        %v1064 = vpop.permute.xlu0 %1063
        %1065 = vrot.lane.b32.xlu0 %v995, 32
        %v1066 = vpop.permute.xlu0 %1065
        %1067 = vrot.lane.b32.xlu0 %v996, 32
        %v1068 = vpop.permute.xlu0 %1067
        %1069 = vrot.lane.b32.xlu0 %v997, 32
        %v1070 = vpop.permute.xlu0 %1069
        %1071 = vrot.lane.b32.xlu0 %v998, 32
        %v1072 = vpop.permute.xlu0 %1071
        %1073 = vrot.lane.b32.xlu0 %v999, 32
        %v1074 = vpop.permute.xlu0 %1073
        %1075 = vrot.lane.b32.xlu0 %v1000, 32
        %v1076 = vpop.permute.xlu0 %1075
        %1077 = vrot.lane.b32.xlu0 %v1001, 32
        %v1078 = vpop.permute.xlu0 %1077
        %1079 = vrot.lane.b32.xlu0 %v1002, 32
        %v1080 = vpop.permute.xlu0 %1079
        %1081 = vrot.lane.b32.xlu0 %v1003, 32
        %v1082 = vpop.permute.xlu0 %1081
        %1083 = vrot.lane.b32.xlu0 %v1004, 32
        %v1084 = vpop.permute.xlu0 %1083
        %1085 = vrot.lane.b32.xlu0 %v1005, 32
        %v1086 = vpop.permute.xlu0 %1085
        %1087 = vrot.lane.b32.xlu0 %v1006, 32
        %v1088 = vpop.permute.xlu0 %1087
        %1089 = vrot.lane.b32.xlu0 %v1007, 32
        %v1090 = vpop.permute.xlu0 %1089
        %1091 = vrot.lane.b32.xlu0 %v1008, 32
        %v1092 = vpop.permute.xlu0 %1091
        %1093 = vrot.lane.b32.xlu0 %v1009, 32
        %v1094 = vpop.permute.xlu0 %1093
        %1095 = vrot.lane.b32.xlu0 %v1010, 32
        %v1096 = vpop.permute.xlu0 %1095
        %1097 = vrot.lane.b32.xlu0 %v1011, 32
        %v1098 = vpop.permute.xlu0 %1097
        %1099 = vrot.lane.b32.xlu0 %v1012, 32
        %v1100 = vpop.permute.xlu0 %1099
        %1101 = vrot.lane.b32.xlu0 %v1013, 32
        %v1102 = vpop.permute.xlu0 %1101
        %1103 = vrot.lane.b32.xlu0 %v1014, 32
        %v1104 = vpop.permute.xlu0 %1103
        %1105 = vrot.lane.b32.xlu0 %v1015, 32
        %v1106 = vpop.permute.xlu0 %1105
        %1107 = vrot.lane.b32.xlu0 %v1016, 32
        %v1108 = vpop.permute.xlu0 %1107
        %1109 = vrot.lane.b32.xlu0 %v1017, 32
        %v1110 = vpop.permute.xlu0 %1109
        %1111 = vrot.lane.b32.xlu0 %v1018, 32
        %v1112 = vpop.permute.xlu0 %1111
        %1113 = vrot.lane.b32.xlu0 %v1019, 32
        %v1114 = vpop.permute.xlu0 %1113
        %1115 = vrot.lane.b32.xlu0 %v1020, 32
        %v1116 = vpop.permute.xlu0 %1115
        %1117 = vrot.lane.b32.xlu0 %v1021, 32
        %v1118 = vpop.permute.xlu0 %1117
        %1119 = vrot.lane.b32.xlu0 %v1022, 32
        %v1120 = vpop.permute.xlu0 %1119
        %1121 = vrot.lane.b32.xlu0 %v1023, 32
        %v1122 = vpop.permute.xlu0 %1121
        %1123 = vrot.lane.b32.xlu0 %v1024, 32
        %v1124 = vpop.permute.xlu0 %1123
        %1125 = vrot.lane.b32.xlu0 %v1025, 32
        %v1126 = vpop.permute.xlu0 %1125
        %1127 = vrot.lane.b32.xlu0 %v1026, 32
        %v1128 = vpop.permute.xlu0 %1127
        %1129 = vrot.lane.b32.xlu0 %v1027, 32
        %v1130 = vpop.permute.xlu0 %1129
        %1131 = vrot.lane.b32.xlu0 %v1028, 32
        %v1132 = vpop.permute.xlu0 %1131
        %1133 = vrot.lane.b32.xlu0 %v1029, 32
        %v1134 = vpop.permute.xlu0 %1133
        %1135 = vrot.lane.b32.xlu0 %v1030, 32
        %v1136 = vpop.permute.xlu0 %1135
        %1137 = vrot.lane.b32.xlu0 %v1031, 32
        %v1138 = vpop.permute.xlu0 %1137
        %1139 = vrot.lane.b32.xlu0 %v1032, 32
        %v1140 = vpop.permute.xlu0 %1139
        %1141 = vrot.lane.b32.xlu0 %v1033, 32
        %v1142 = vpop.permute.xlu0 %1141
        %1143 = vrot.lane.b32.xlu0 %v1034, 32
        %v1144 = vpop.permute.xlu0 %1143
        %1145 = vrot.lane.b32.xlu0 %v1035, 32
        %v1146 = vpop.permute.xlu0 %1145
        %1147 = vrot.lane.b32.xlu0 %v1036, 32
        %v1148 = vpop.permute.xlu0 %1147
        %1149 = vrot.lane.b32.xlu0 %v1037, 32
        %v1150 = vpop.permute.xlu0 %1149
        %1151 = vrot.lane.b32.xlu0 %v1038, 32
        %v1152 = vpop.permute.xlu0 %1151
        %1153 = vrot.lane.b32.xlu0 %v1039, 32
        %v1154 = vpop.permute.xlu0 %1153
        %1155 = vrot.lane.b32.xlu0 %v1040, 32
        %v1156 = vpop.permute.xlu0 %1155
        %1157 = vrot.lane.b32.xlu0 %v1041, 32
        %v1158 = vpop.permute.xlu0 %1157
        %1159 = vrot.lane.b32.xlu0 %v1042, 32
        %v1160 = vpop.permute.xlu0 %1159
        %1161 = vrot.lane.b32.xlu0 %v1043, 32
        %v1162 = vpop.permute.xlu0 %1161
        %1163 = vrot.lane.b32.xlu0 %v1044, 32
        %v1164 = vpop.permute.xlu0 %1163
        %1165 = vrot.lane.b32.xlu0 %v1045, 32
        %v1166 = vpop.permute.xlu0 %1165
        %1167 = vrot.lane.b32.xlu0 %v1046, 32
        %v1168 = vpop.permute.xlu0 %1167
        %1169 = vrot.lane.b32.xlu0 %v1047, 32
        %v1170 = vpop.permute.xlu0 %1169
        %1171 = vrot.lane.b32.xlu0 %v1048, 32
        %v1172 = vpop.permute.xlu0 %1171
        %1173 = vrot.lane.b32.xlu0 %v1049, 32
        %v1174 = vpop.permute.xlu0 %1173
        %1175 = vrot.lane.b32.xlu0 %v1050, 32
        %v1176 = vpop.permute.xlu0 %1175
        %1177 = vrot.lane.b32.xlu0 %v1051, 32
        %v1178 = vpop.permute.xlu0 %1177
        %1179 = vrot.lane.b32.xlu0 %v1052, 32
        %v1180 = vpop.permute.xlu0 %1179
        %v1181 = vmax.f32 %v989, %v1054
        %v1182 = vmax.f32 %v990, %v1056
        %v1183 = vmax.f32 %v991, %v1058
        %v1184 = vmax.f32 %v992, %v1060
        %v1185 = vmax.f32 %v993, %v1062
        %v1186 = vmax.f32 %v994, %v1064
        %v1187 = vmax.f32 %v995, %v1066
        %v1188 = vmax.f32 %v996, %v1068
        %v1189 = vmax.f32 %v997, %v1070
        %v1190 = vmax.f32 %v998, %v1072
        %v1191 = vmax.f32 %v999, %v1074
        %v1192 = vmax.f32 %v1000, %v1076
        %v1193 = vmax.f32 %v1001, %v1078
        %v1194 = vmax.f32 %v1002, %v1080
        %v1195 = vmax.f32 %v1003, %v1082
        %v1196 = vmax.f32 %v1004, %v1084
        %v1197 = vmax.f32 %v1005, %v1086
        %v1198 = vmax.f32 %v1006, %v1088
        %v1199 = vmax.f32 %v1007, %v1090
        %v1200 = vmax.f32 %v1008, %v1092
        %v1201 = vmax.f32 %v1009, %v1094
        %v1202 = vmax.f32 %v1010, %v1096
        %v1203 = vmax.f32 %v1011, %v1098
        %v1204 = vmax.f32 %v1012, %v1100
        %v1205 = vmax.f32 %v1013, %v1102
        %v1206 = vmax.f32 %v1014, %v1104
        %v1207 = vmax.f32 %v1015, %v1106
        %v1208 = vmax.f32 %v1016, %v1108
        %v1209 = vmax.f32 %v1017, %v1110
        %v1210 = vmax.f32 %v1018, %v1112
        %v1211 = vmax.f32 %v1019, %v1114
        %v1212 = vmax.f32 %v1020, %v1116
        %v1213 = vmax.f32 %v1021, %v1118
        %v1214 = vmax.f32 %v1022, %v1120
        %v1215 = vmax.f32 %v1023, %v1122
        %v1216 = vmax.f32 %v1024, %v1124
        %v1217 = vmax.f32 %v1025, %v1126
        %v1218 = vmax.f32 %v1026, %v1128
        %v1219 = vmax.f32 %v1027, %v1130
        %v1220 = vmax.f32 %v1028, %v1132
        %v1221 = vmax.f32 %v1029, %v1134
        %v1222 = vmax.f32 %v1030, %v1136
        %v1223 = vmax.f32 %v1031, %v1138
        %v1224 = vmax.f32 %v1032, %v1140
        %v1225 = vmax.f32 %v1033, %v1142
        %v1226 = vmax.f32 %v1034, %v1144
        %v1227 = vmax.f32 %v1035, %v1146
        %v1228 = vmax.f32 %v1036, %v1148
        %v1229 = vmax.f32 %v1037, %v1150
        %v1230 = vmax.f32 %v1038, %v1152
        %v1231 = vmax.f32 %v1039, %v1154
        %v1232 = vmax.f32 %v1040, %v1156
        %v1233 = vmax.f32 %v1041, %v1158
        %v1234 = vmax.f32 %v1042, %v1160
        %v1235 = vmax.f32 %v1043, %v1162
        %v1236 = vmax.f32 %v1044, %v1164
        %v1237 = vmax.f32 %v1045, %v1166
        %v1238 = vmax.f32 %v1046, %v1168
        %v1239 = vmax.f32 %v1047, %v1170
        %v1240 = vmax.f32 %v1048, %v1172
        %v1241 = vmax.f32 %v1049, %v1174
        %v1242 = vmax.f32 %v1050, %v1176
        %v1243 = vmax.f32 %v1051, %v1178
        %v1244 = vmax.f32 %v1052, %v1180
        %1245 = vrot.lane.b32.xlu0 %v1181, 64
        %v1246 = vpop.permute.xlu0 %1245
        %1247 = vrot.lane.b32.xlu0 %v1182, 64
        %v1248 = vpop.permute.xlu0 %1247
        %1249 = vrot.lane.b32.xlu0 %v1183, 64
        %v1250 = vpop.permute.xlu0 %1249
        %1251 = vrot.lane.b32.xlu0 %v1184, 64
        %v1252 = vpop.permute.xlu0 %1251
        %1253 = vrot.lane.b32.xlu0 %v1185, 64
        %v1254 = vpop.permute.xlu0 %1253
        %1255 = vrot.lane.b32.xlu0 %v1186, 64
        %v1256 = vpop.permute.xlu0 %1255
        %1257 = vrot.lane.b32.xlu0 %v1187, 64
        %v1258 = vpop.permute.xlu0 %1257
        %1259 = vrot.lane.b32.xlu0 %v1188, 64
        %v1260 = vpop.permute.xlu0 %1259
        %1261 = vrot.lane.b32.xlu0 %v1189, 64
        %v1262 = vpop.permute.xlu0 %1261
        %1263 = vrot.lane.b32.xlu0 %v1190, 64
        %v1264 = vpop.permute.xlu0 %1263
        %1265 = vrot.lane.b32.xlu0 %v1191, 64
        %v1266 = vpop.permute.xlu0 %1265
        %1267 = vrot.lane.b32.xlu0 %v1192, 64
        %v1268 = vpop.permute.xlu0 %1267
        %1269 = vrot.lane.b32.xlu0 %v1193, 64
        %v1270 = vpop.permute.xlu0 %1269
        %1271 = vrot.lane.b32.xlu0 %v1194, 64
        %v1272 = vpop.permute.xlu0 %1271
        %1273 = vrot.lane.b32.xlu0 %v1195, 64
        %v1274 = vpop.permute.xlu0 %1273
        %1275 = vrot.lane.b32.xlu0 %v1196, 64
        %v1276 = vpop.permute.xlu0 %1275
        %1277 = vrot.lane.b32.xlu0 %v1197, 64
        %v1278 = vpop.permute.xlu0 %1277
        %1279 = vrot.lane.b32.xlu0 %v1198, 64
        %v1280 = vpop.permute.xlu0 %1279
        %1281 = vrot.lane.b32.xlu0 %v1199, 64
        %v1282 = vpop.permute.xlu0 %1281
        %1283 = vrot.lane.b32.xlu0 %v1200, 64
        %v1284 = vpop.permute.xlu0 %1283
        %1285 = vrot.lane.b32.xlu0 %v1201, 64
        %v1286 = vpop.permute.xlu0 %1285
        %1287 = vrot.lane.b32.xlu0 %v1202, 64
        %v1288 = vpop.permute.xlu0 %1287
        %1289 = vrot.lane.b32.xlu0 %v1203, 64
        %v1290 = vpop.permute.xlu0 %1289
        %1291 = vrot.lane.b32.xlu0 %v1204, 64
        %v1292 = vpop.permute.xlu0 %1291
        %1293 = vrot.lane.b32.xlu0 %v1205, 64
        %v1294 = vpop.permute.xlu0 %1293
        %1295 = vrot.lane.b32.xlu0 %v1206, 64
        %v1296 = vpop.permute.xlu0 %1295
        %1297 = vrot.lane.b32.xlu0 %v1207, 64
        %v1298 = vpop.permute.xlu0 %1297
        %1299 = vrot.lane.b32.xlu0 %v1208, 64
        %v1300 = vpop.permute.xlu0 %1299
        %1301 = vrot.lane.b32.xlu0 %v1209, 64
        %v1302 = vpop.permute.xlu0 %1301
        %1303 = vrot.lane.b32.xlu0 %v1210, 64
        %v1304 = vpop.permute.xlu0 %1303
        %1305 = vrot.lane.b32.xlu0 %v1211, 64
        %v1306 = vpop.permute.xlu0 %1305
        %1307 = vrot.lane.b32.xlu0 %v1212, 64
        %v1308 = vpop.permute.xlu0 %1307
        %1309 = vrot.lane.b32.xlu0 %v1213, 64
        %v1310 = vpop.permute.xlu0 %1309
        %1311 = vrot.lane.b32.xlu0 %v1214, 64
        %v1312 = vpop.permute.xlu0 %1311
        %1313 = vrot.lane.b32.xlu0 %v1215, 64
        %v1314 = vpop.permute.xlu0 %1313
        %1315 = vrot.lane.b32.xlu0 %v1216, 64
        %v1316 = vpop.permute.xlu0 %1315
        %1317 = vrot.lane.b32.xlu0 %v1217, 64
        %v1318 = vpop.permute.xlu0 %1317
        %1319 = vrot.lane.b32.xlu0 %v1218, 64
        %v1320 = vpop.permute.xlu0 %1319
        %1321 = vrot.lane.b32.xlu0 %v1219, 64
        %v1322 = vpop.permute.xlu0 %1321
        %1323 = vrot.lane.b32.xlu0 %v1220, 64
        %v1324 = vpop.permute.xlu0 %1323
        %1325 = vrot.lane.b32.xlu0 %v1221, 64
        %v1326 = vpop.permute.xlu0 %1325
        %1327 = vrot.lane.b32.xlu0 %v1222, 64
        %v1328 = vpop.permute.xlu0 %1327
        %1329 = vrot.lane.b32.xlu0 %v1223, 64
        %v1330 = vpop.permute.xlu0 %1329
        %1331 = vrot.lane.b32.xlu0 %v1224, 64
        %v1332 = vpop.permute.xlu0 %1331
        %1333 = vrot.lane.b32.xlu0 %v1225, 64
        %v1334 = vpop.permute.xlu0 %1333
        %1335 = vrot.lane.b32.xlu0 %v1226, 64
        %v1336 = vpop.permute.xlu0 %1335
        %1337 = vrot.lane.b32.xlu0 %v1227, 64
        %v1338 = vpop.permute.xlu0 %1337
        %1339 = vrot.lane.b32.xlu0 %v1228, 64
        %v1340 = vpop.permute.xlu0 %1339
        %1341 = vrot.lane.b32.xlu0 %v1229, 64
        %v1342 = vpop.permute.xlu0 %1341
        %1343 = vrot.lane.b32.xlu0 %v1230, 64
        %v1344 = vpop.permute.xlu0 %1343
        %1345 = vrot.lane.b32.xlu0 %v1231, 64
        %v1346 = vpop.permute.xlu0 %1345
        %1347 = vrot.lane.b32.xlu0 %v1232, 64
        %v1348 = vpop.permute.xlu0 %1347
        %1349 = vrot.lane.b32.xlu0 %v1233, 64
        %v1350 = vpop.permute.xlu0 %1349
        %1351 = vrot.lane.b32.xlu0 %v1234, 64
        %v1352 = vpop.permute.xlu0 %1351
        %1353 = vrot.lane.b32.xlu0 %v1235, 64
        %v1354 = vpop.permute.xlu0 %1353
        %1355 = vrot.lane.b32.xlu0 %v1236, 64
        %v1356 = vpop.permute.xlu0 %1355
        %1357 = vrot.lane.b32.xlu0 %v1237, 64
        %v1358 = vpop.permute.xlu0 %1357
        %1359 = vrot.lane.b32.xlu0 %v1238, 64
        %v1360 = vpop.permute.xlu0 %1359
        %1361 = vrot.lane.b32.xlu0 %v1239, 64
        %v1362 = vpop.permute.xlu0 %1361
        %1363 = vrot.lane.b32.xlu0 %v1240, 64
        %v1364 = vpop.permute.xlu0 %1363
        %1365 = vrot.lane.b32.xlu0 %v1241, 64
        %v1366 = vpop.permute.xlu0 %1365
        %1367 = vrot.lane.b32.xlu0 %v1242, 64
        %v1368 = vpop.permute.xlu0 %1367
        %1369 = vrot.lane.b32.xlu0 %v1243, 64
        %v1370 = vpop.permute.xlu0 %1369
        %1371 = vrot.lane.b32.xlu0 %v1244, 64
        %v1372 = vpop.permute.xlu0 %1371
        %v1373 = vmax.f32 %v1181, %v1246
        %v1374 = vmax.f32 %v1182, %v1248
        %v1375 = vmax.f32 %v1183, %v1250
        %v1376 = vmax.f32 %v1184, %v1252
        %v1377 = vmax.f32 %v1185, %v1254
        %v1378 = vmax.f32 %v1186, %v1256
        %v1379 = vmax.f32 %v1187, %v1258
        %v1380 = vmax.f32 %v1188, %v1260
        %v1381 = vmax.f32 %v1189, %v1262
        %v1382 = vmax.f32 %v1190, %v1264
        %v1383 = vmax.f32 %v1191, %v1266
        %v1384 = vmax.f32 %v1192, %v1268
        %v1385 = vmax.f32 %v1193, %v1270
        %v1386 = vmax.f32 %v1194, %v1272
        %v1387 = vmax.f32 %v1195, %v1274
        %v1388 = vmax.f32 %v1196, %v1276
        %v1389 = vmax.f32 %v1197, %v1278
        %v1390 = vmax.f32 %v1198, %v1280
        %v1391 = vmax.f32 %v1199, %v1282
        %v1392 = vmax.f32 %v1200, %v1284
        %v1393 = vmax.f32 %v1201, %v1286
        %v1394 = vmax.f32 %v1202, %v1288
        %v1395 = vmax.f32 %v1203, %v1290
        %v1396 = vmax.f32 %v1204, %v1292
        %v1397 = vmax.f32 %v1205, %v1294
        %v1398 = vmax.f32 %v1206, %v1296
        %v1399 = vmax.f32 %v1207, %v1298
        %v1400 = vmax.f32 %v1208, %v1300
        %v1401 = vmax.f32 %v1209, %v1302
        %v1402 = vmax.f32 %v1210, %v1304
        %v1403 = vmax.f32 %v1211, %v1306
        %v1404 = vmax.f32 %v1212, %v1308
        %v1405 = vmax.f32 %v1213, %v1310
        %v1406 = vmax.f32 %v1214, %v1312
        %v1407 = vmax.f32 %v1215, %v1314
        %v1408 = vmax.f32 %v1216, %v1316
        %v1409 = vmax.f32 %v1217, %v1318
        %v1410 = vmax.f32 %v1218, %v1320
        %v1411 = vmax.f32 %v1219, %v1322
        %v1412 = vmax.f32 %v1220, %v1324
        %v1413 = vmax.f32 %v1221, %v1326
        %v1414 = vmax.f32 %v1222, %v1328
        %v1415 = vmax.f32 %v1223, %v1330
        %v1416 = vmax.f32 %v1224, %v1332
        %v1417 = vmax.f32 %v1225, %v1334
        %v1418 = vmax.f32 %v1226, %v1336
        %v1419 = vmax.f32 %v1227, %v1338
        %v1420 = vmax.f32 %v1228, %v1340
        %v1421 = vmax.f32 %v1229, %v1342
        %v1422 = vmax.f32 %v1230, %v1344
        %v1423 = vmax.f32 %v1231, %v1346
        %v1424 = vmax.f32 %v1232, %v1348
        %v1425 = vmax.f32 %v1233, %v1350
        %v1426 = vmax.f32 %v1234, %v1352
        %v1427 = vmax.f32 %v1235, %v1354
        %v1428 = vmax.f32 %v1236, %v1356
        %v1429 = vmax.f32 %v1237, %v1358
        %v1430 = vmax.f32 %v1238, %v1360
        %v1431 = vmax.f32 %v1239, %v1362
        %v1432 = vmax.f32 %v1240, %v1364
        %v1433 = vmax.f32 %v1241, %v1366
        %v1434 = vmax.f32 %v1242, %v1368
        %v1435 = vmax.f32 %v1243, %v1370
        %v1436 = vmax.f32 %v1244, %v1372
        %v1437 = vsub.f32 %v607, %v1373
        %v1438 = vsub.f32 %v610, %v1374
        %v1439 = vsub.f32 %v615, %v1375
        %v1440 = vsub.f32 %v618, %v1376
        %v1441 = vsub.f32 %v623, %v1377
        %v1442 = vsub.f32 %v626, %v1378
        %v1443 = vsub.f32 %v631, %v1379
        %v1444 = vsub.f32 %v634, %v1380
        %v1445 = vsub.f32 %v639, %v1381
        %v1446 = vsub.f32 %v642, %v1382
        %v1447 = vsub.f32 %v647, %v1383
        %v1448 = vsub.f32 %v650, %v1384
        %v1449 = vsub.f32 %v655, %v1385
        %v1450 = vsub.f32 %v658, %v1386
        %v1451 = vsub.f32 %v663, %v1387
        %v1452 = vsub.f32 %v666, %v1388
        %v1453 = vsub.f32 %v671, %v1389
        %v1454 = vsub.f32 %v674, %v1390
        %v1455 = vsub.f32 %v679, %v1391
        %v1456 = vsub.f32 %v682, %v1392
        %v1457 = vsub.f32 %v687, %v1393
        %v1458 = vsub.f32 %v690, %v1394
        %v1459 = vsub.f32 %v695, %v1395
        %v1460 = vsub.f32 %v698, %v1396
        %v1461 = vsub.f32 %v703, %v1397
        %v1462 = vsub.f32 %v706, %v1398
        %v1463 = vsub.f32 %v711, %v1399
        %v1464 = vsub.f32 %v714, %v1400
        %v1465 = vsub.f32 %v719, %v1401
        %v1466 = vsub.f32 %v722, %v1402
        %v1467 = vsub.f32 %v727, %v1403
        %v1468 = vsub.f32 %v730, %v1404
        %v1469 = vsub.f32 %v735, %v1405
        %v1470 = vsub.f32 %v738, %v1406
        %v1471 = vsub.f32 %v743, %v1407
        %v1472 = vsub.f32 %v746, %v1408
        %v1473 = vsub.f32 %v751, %v1409
        %v1474 = vsub.f32 %v754, %v1410
        %v1475 = vsub.f32 %v759, %v1411
        %v1476 = vsub.f32 %v762, %v1412
        %v1477 = vsub.f32 %v767, %v1413
        %v1478 = vsub.f32 %v770, %v1414
        %v1479 = vsub.f32 %v775, %v1415
        %v1480 = vsub.f32 %v778, %v1416
        %v1481 = vsub.f32 %v783, %v1417
        %v1482 = vsub.f32 %v786, %v1418
        %v1483 = vsub.f32 %v791, %v1419
        %v1484 = vsub.f32 %v794, %v1420
        %v1485 = vsub.f32 %v799, %v1421
        %v1486 = vsub.f32 %v802, %v1422
        %v1487 = vsub.f32 %v807, %v1423
        %v1488 = vsub.f32 %v810, %v1424
        %v1489 = vsub.f32 %v815, %v1425
        %v1490 = vsub.f32 %v818, %v1426
        %v1491 = vsub.f32 %v823, %v1427
        %v1492 = vsub.f32 %v826, %v1428
        %v1493 = vsub.f32 %v831, %v1429
        %v1494 = vsub.f32 %v834, %v1430
        %v1495 = vsub.f32 %v839, %v1431
        %v1496 = vsub.f32 %v842, %v1432
        %v1497 = vsub.f32 %v847, %v1433
        %v1498 = vsub.f32 %v850, %v1434
        %v1499 = vsub.f32 %v855, %v1435
        %v1500 = vsub.f32 %v858, %v1436
        %v1501 = vmul.f32 %v1437, 1.442695
        %v1502 = vpow.pop %v1501
        %v1503 = vmul.f32 %v1438, 1.442695
        %v1504 = vpow.pop %v1503
        %v1505 = vmul.f32 %v1439, 1.442695
        %v1506 = vpow.pop %v1505
        %v1507 = vmul.f32 %v1440, 1.442695
        %v1508 = vpow.pop %v1507
        %v1509 = vmul.f32 %v1441, 1.442695
        %v1510 = vpow.pop %v1509
        %v1511 = vmul.f32 %v1442, 1.442695
        %v1512 = vpow.pop %v1511
        %v1513 = vmul.f32 %v1443, 1.442695
        %v1514 = vpow.pop %v1513
        %v1515 = vmul.f32 %v1444, 1.442695
        %v1516 = vpow.pop %v1515
        %v1517 = vmul.f32 %v1445, 1.442695
        %v1518 = vpow.pop %v1517
        %v1519 = vmul.f32 %v1446, 1.442695
        %v1520 = vpow.pop %v1519
        %v1521 = vmul.f32 %v1447, 1.442695
        %v1522 = vpow.pop %v1521
        %v1523 = vmul.f32 %v1448, 1.442695
        %v1524 = vpow.pop %v1523
        %v1525 = vmul.f32 %v1449, 1.442695
        %v1526 = vpow.pop %v1525
        %v1527 = vmul.f32 %v1450, 1.442695
        %v1528 = vpow.pop %v1527
        %v1529 = vmul.f32 %v1451, 1.442695
        %v1530 = vpow.pop %v1529
        %v1531 = vmul.f32 %v1452, 1.442695
        %v1532 = vpow.pop %v1531
        %v1533 = vmul.f32 %v1453, 1.442695
        %v1534 = vpow.pop %v1533
        %v1535 = vmul.f32 %v1454, 1.442695
        %v1536 = vpow.pop %v1535
        %v1537 = vmul.f32 %v1455, 1.442695
        %v1538 = vpow.pop %v1537
        %v1539 = vmul.f32 %v1456, 1.442695
        %v1540 = vpow.pop %v1539
        %v1541 = vmul.f32 %v1457, 1.442695
        %v1542 = vpow.pop %v1541
        %v1543 = vmul.f32 %v1458, 1.442695
        %v1544 = vpow.pop %v1543
        %v1545 = vmul.f32 %v1459, 1.442695
        %v1546 = vpow.pop %v1545
        %v1547 = vmul.f32 %v1460, 1.442695
        %v1548 = vpow.pop %v1547
        %v1549 = vmul.f32 %v1461, 1.442695
        %v1550 = vpow.pop %v1549
        %v1551 = vmul.f32 %v1462, 1.442695
        %v1552 = vpow.pop %v1551
        %v1553 = vmul.f32 %v1463, 1.442695
        %v1554 = vpow.pop %v1553
        %v1555 = vmul.f32 %v1464, 1.442695
        %v1556 = vpow.pop %v1555
        %v1557 = vmul.f32 %v1465, 1.442695
        %v1558 = vpow.pop %v1557
        %v1559 = vmul.f32 %v1466, 1.442695
        %v1560 = vpow.pop %v1559
        %v1561 = vmul.f32 %v1467, 1.442695
        %v1562 = vpow.pop %v1561
        %v1563 = vmul.f32 %v1468, 1.442695
        %v1564 = vpow.pop %v1563
        %v1565 = vmul.f32 %v1469, 1.442695
        %v1566 = vpow.pop %v1565
        %v1567 = vmul.f32 %v1470, 1.442695
        %v1568 = vpow.pop %v1567
        %v1569 = vmul.f32 %v1471, 1.442695
        %v1570 = vpow.pop %v1569
        %v1571 = vmul.f32 %v1472, 1.442695
        %v1572 = vpow.pop %v1571
        %v1573 = vmul.f32 %v1473, 1.442695
        %v1574 = vpow.pop %v1573
        %v1575 = vmul.f32 %v1474, 1.442695
        %v1576 = vpow.pop %v1575
        %v1577 = vmul.f32 %v1475, 1.442695
        %v1578 = vpow.pop %v1577
        %v1579 = vmul.f32 %v1476, 1.442695
        %v1580 = vpow.pop %v1579
        %v1581 = vmul.f32 %v1477, 1.442695
        %v1582 = vpow.pop %v1581
        %v1583 = vmul.f32 %v1478, 1.442695
        %v1584 = vpow.pop %v1583
        %v1585 = vmul.f32 %v1479, 1.442695
        %v1586 = vpow.pop %v1585
        %v1587 = vmul.f32 %v1480, 1.442695
        %v1588 = vpow.pop %v1587
        %v1589 = vmul.f32 %v1481, 1.442695
        %v1590 = vpow.pop %v1589
        %v1591 = vmul.f32 %v1482, 1.442695
        %v1592 = vpow.pop %v1591
        %v1593 = vmul.f32 %v1483, 1.442695
        %v1594 = vpow.pop %v1593
        %v1595 = vmul.f32 %v1484, 1.442695
        %v1596 = vpow.pop %v1595
        %v1597 = vmul.f32 %v1485, 1.442695
        %v1598 = vpow.pop %v1597
        %v1599 = vmul.f32 %v1486, 1.442695
        %v1600 = vpow.pop %v1599
        %v1601 = vmul.f32 %v1487, 1.442695
        %v1602 = vpow.pop %v1601
        %v1603 = vmul.f32 %v1488, 1.442695
        %v1604 = vpow.pop %v1603
        %v1605 = vmul.f32 %v1489, 1.442695
        %v1606 = vpow.pop %v1605
        %v1607 = vmul.f32 %v1490, 1.442695
        %v1608 = vpow.pop %v1607
        %v1609 = vmul.f32 %v1491, 1.442695
        %v1610 = vpow.pop %v1609
        %v1611 = vmul.f32 %v1492, 1.442695
        %v1612 = vpow.pop %v1611
        %v1613 = vmul.f32 %v1493, 1.442695
        %v1614 = vpow.pop %v1613
        %v1615 = vmul.f32 %v1494, 1.442695
        %v1616 = vpow.pop %v1615
        %v1617 = vmul.f32 %v1495, 1.442695
        %v1618 = vpow.pop %v1617
        %v1619 = vmul.f32 %v1496, 1.442695
        %v1620 = vpow.pop %v1619
        %v1621 = vmul.f32 %v1497, 1.442695
        %v1622 = vpow.pop %v1621
        %v1623 = vmul.f32 %v1498, 1.442695
        %v1624 = vpow.pop %v1623
        %v1625 = vmul.f32 %v1499, 1.442695
        %v1626 = vpow.pop %v1625
        %v1627 = vmul.f32 %v1500, 1.442695
        %v1628 = vpow.pop %v1627
        %1629 = vrot.lane.b32.xlu0 %v1502, 16
        %v1630 = vpop.permute.xlu0 %1629
        %1631 = vrot.lane.b32.xlu0 %v1504, 16
        %v1632 = vpop.permute.xlu0 %1631
        %1633 = vrot.lane.b32.xlu0 %v1506, 16
        %v1634 = vpop.permute.xlu0 %1633
        %1635 = vrot.lane.b32.xlu0 %v1508, 16
        %v1636 = vpop.permute.xlu0 %1635
        %1637 = vrot.lane.b32.xlu0 %v1510, 16
        %v1638 = vpop.permute.xlu0 %1637
        %1639 = vrot.lane.b32.xlu0 %v1512, 16
        %v1640 = vpop.permute.xlu0 %1639
        %1641 = vrot.lane.b32.xlu0 %v1514, 16
        %v1642 = vpop.permute.xlu0 %1641
        %1643 = vrot.lane.b32.xlu0 %v1516, 16
        %v1644 = vpop.permute.xlu0 %1643
        %1645 = vrot.lane.b32.xlu0 %v1518, 16
        %v1646 = vpop.permute.xlu0 %1645
        %1647 = vrot.lane.b32.xlu0 %v1520, 16
        %v1648 = vpop.permute.xlu0 %1647
        %1649 = vrot.lane.b32.xlu0 %v1522, 16
        %v1650 = vpop.permute.xlu0 %1649
        %1651 = vrot.lane.b32.xlu0 %v1524, 16
        %v1652 = vpop.permute.xlu0 %1651
        %1653 = vrot.lane.b32.xlu0 %v1526, 16
        %v1654 = vpop.permute.xlu0 %1653
        %1655 = vrot.lane.b32.xlu0 %v1528, 16
        %v1656 = vpop.permute.xlu0 %1655
        %1657 = vrot.lane.b32.xlu0 %v1530, 16
        %v1658 = vpop.permute.xlu0 %1657
        %1659 = vrot.lane.b32.xlu0 %v1532, 16
        %v1660 = vpop.permute.xlu0 %1659
        %1661 = vrot.lane.b32.xlu0 %v1534, 16
        %v1662 = vpop.permute.xlu0 %1661
        %1663 = vrot.lane.b32.xlu0 %v1536, 16
        %v1664 = vpop.permute.xlu0 %1663
        %1665 = vrot.lane.b32.xlu0 %v1538, 16
        %v1666 = vpop.permute.xlu0 %1665
        %1667 = vrot.lane.b32.xlu0 %v1540, 16
        %v1668 = vpop.permute.xlu0 %1667
        %1669 = vrot.lane.b32.xlu0 %v1542, 16
        %v1670 = vpop.permute.xlu0 %1669
        %1671 = vrot.lane.b32.xlu0 %v1544, 16
        %v1672 = vpop.permute.xlu0 %1671
        %1673 = vrot.lane.b32.xlu0 %v1546, 16
        %v1674 = vpop.permute.xlu0 %1673
        %1675 = vrot.lane.b32.xlu0 %v1548, 16
        %v1676 = vpop.permute.xlu0 %1675
        %1677 = vrot.lane.b32.xlu0 %v1550, 16
        %v1678 = vpop.permute.xlu0 %1677
        %1679 = vrot.lane.b32.xlu0 %v1552, 16
        %v1680 = vpop.permute.xlu0 %1679
        %1681 = vrot.lane.b32.xlu0 %v1554, 16
        %v1682 = vpop.permute.xlu0 %1681
        %1683 = vrot.lane.b32.xlu0 %v1556, 16
        %v1684 = vpop.permute.xlu0 %1683
        %1685 = vrot.lane.b32.xlu0 %v1558, 16
        %v1686 = vpop.permute.xlu0 %1685
        %1687 = vrot.lane.b32.xlu0 %v1560, 16
        %v1688 = vpop.permute.xlu0 %1687
        %1689 = vrot.lane.b32.xlu0 %v1562, 16
        %v1690 = vpop.permute.xlu0 %1689
        %1691 = vrot.lane.b32.xlu0 %v1564, 16
        %v1692 = vpop.permute.xlu0 %1691
        %1693 = vrot.lane.b32.xlu0 %v1566, 16
        %v1694 = vpop.permute.xlu0 %1693
        %1695 = vrot.lane.b32.xlu0 %v1568, 16
        %v1696 = vpop.permute.xlu0 %1695
        %1697 = vrot.lane.b32.xlu0 %v1570, 16
        %v1698 = vpop.permute.xlu0 %1697
        %1699 = vrot.lane.b32.xlu0 %v1572, 16
        %v1700 = vpop.permute.xlu0 %1699
        %1701 = vrot.lane.b32.xlu0 %v1574, 16
        %v1702 = vpop.permute.xlu0 %1701
        %1703 = vrot.lane.b32.xlu0 %v1576, 16
        %v1704 = vpop.permute.xlu0 %1703
        %1705 = vrot.lane.b32.xlu0 %v1578, 16
        %v1706 = vpop.permute.xlu0 %1705
        %1707 = vrot.lane.b32.xlu0 %v1580, 16
        %v1708 = vpop.permute.xlu0 %1707
        %1709 = vrot.lane.b32.xlu0 %v1582, 16
        %v1710 = vpop.permute.xlu0 %1709
        %1711 = vrot.lane.b32.xlu0 %v1584, 16
        %v1712 = vpop.permute.xlu0 %1711
        %1713 = vrot.lane.b32.xlu0 %v1586, 16
        %v1714 = vpop.permute.xlu0 %1713
        %1715 = vrot.lane.b32.xlu0 %v1588, 16
        %v1716 = vpop.permute.xlu0 %1715
        %1717 = vrot.lane.b32.xlu0 %v1590, 16
        %v1718 = vpop.permute.xlu0 %1717
        %1719 = vrot.lane.b32.xlu0 %v1592, 16
        %v1720 = vpop.permute.xlu0 %1719
        %1721 = vrot.lane.b32.xlu0 %v1594, 16
        %v1722 = vpop.permute.xlu0 %1721
        %1723 = vrot.lane.b32.xlu0 %v1596, 16
        %v1724 = vpop.permute.xlu0 %1723
        %1725 = vrot.lane.b32.xlu0 %v1598, 16
        %v1726 = vpop.permute.xlu0 %1725
        %1727 = vrot.lane.b32.xlu0 %v1600, 16
        %v1728 = vpop.permute.xlu0 %1727
        %1729 = vrot.lane.b32.xlu0 %v1602, 16
        %v1730 = vpop.permute.xlu0 %1729
        %1731 = vrot.lane.b32.xlu0 %v1604, 16
        %v1732 = vpop.permute.xlu0 %1731
        %1733 = vrot.lane.b32.xlu0 %v1606, 16
        %v1734 = vpop.permute.xlu0 %1733
        %1735 = vrot.lane.b32.xlu0 %v1608, 16
        %v1736 = vpop.permute.xlu0 %1735
        %1737 = vrot.lane.b32.xlu0 %v1610, 16
        %v1738 = vpop.permute.xlu0 %1737
        %1739 = vrot.lane.b32.xlu0 %v1612, 16
        %v1740 = vpop.permute.xlu0 %1739
        %1741 = vrot.lane.b32.xlu0 %v1614, 16
        %v1742 = vpop.permute.xlu0 %1741
        %1743 = vrot.lane.b32.xlu0 %v1616, 16
        %v1744 = vpop.permute.xlu0 %1743
        %1745 = vrot.lane.b32.xlu0 %v1618, 16
        %v1746 = vpop.permute.xlu0 %1745
        %1747 = vrot.lane.b32.xlu0 %v1620, 16
        %v1748 = vpop.permute.xlu0 %1747
        %1749 = vrot.lane.b32.xlu0 %v1622, 16
        %v1750 = vpop.permute.xlu0 %1749
        %1751 = vrot.lane.b32.xlu0 %v1624, 16
        %v1752 = vpop.permute.xlu0 %1751
        %1753 = vrot.lane.b32.xlu0 %v1626, 16
        %v1754 = vpop.permute.xlu0 %1753
        %1755 = vrot.lane.b32.xlu0 %v1628, 16
        %v1756 = vpop.permute.xlu0 %1755
        %v1757 = vadd.f32 %v1502, %v1630
        %v1758 = vadd.f32 %v1504, %v1632
        %v1759 = vadd.f32 %v1506, %v1634
        %v1760 = vadd.f32 %v1508, %v1636
        %v1761 = vadd.f32 %v1510, %v1638
        %v1762 = vadd.f32 %v1512, %v1640
        %v1763 = vadd.f32 %v1514, %v1642
        %v1764 = vadd.f32 %v1516, %v1644
        %v1765 = vadd.f32 %v1518, %v1646
        %v1766 = vadd.f32 %v1520, %v1648
        %v1767 = vadd.f32 %v1522, %v1650
        %v1768 = vadd.f32 %v1524, %v1652
        %v1769 = vadd.f32 %v1526, %v1654
        %v1770 = vadd.f32 %v1528, %v1656
        %v1771 = vadd.f32 %v1530, %v1658
        %v1772 = vadd.f32 %v1532, %v1660
        %v1773 = vadd.f32 %v1534, %v1662
        %v1774 = vadd.f32 %v1536, %v1664
        %v1775 = vadd.f32 %v1538, %v1666
        %v1776 = vadd.f32 %v1540, %v1668
        %v1777 = vadd.f32 %v1542, %v1670
        %v1778 = vadd.f32 %v1544, %v1672
        %v1779 = vadd.f32 %v1546, %v1674
        %v1780 = vadd.f32 %v1548, %v1676
        %v1781 = vadd.f32 %v1550, %v1678
        %v1782 = vadd.f32 %v1552, %v1680
        %v1783 = vadd.f32 %v1554, %v1682
        %v1784 = vadd.f32 %v1556, %v1684
        %v1785 = vadd.f32 %v1558, %v1686
        %v1786 = vadd.f32 %v1560, %v1688
        %v1787 = vadd.f32 %v1562, %v1690
        %v1788 = vadd.f32 %v1564, %v1692
        %v1789 = vadd.f32 %v1566, %v1694
        %v1790 = vadd.f32 %v1568, %v1696
        %v1791 = vadd.f32 %v1570, %v1698
        %v1792 = vadd.f32 %v1572, %v1700
        %v1793 = vadd.f32 %v1574, %v1702
        %v1794 = vadd.f32 %v1576, %v1704
        %v1795 = vadd.f32 %v1578, %v1706
        %v1796 = vadd.f32 %v1580, %v1708
        %v1797 = vadd.f32 %v1582, %v1710
        %v1798 = vadd.f32 %v1584, %v1712
        %v1799 = vadd.f32 %v1586, %v1714
        %v1800 = vadd.f32 %v1588, %v1716
        %v1801 = vadd.f32 %v1590, %v1718
        %v1802 = vadd.f32 %v1592, %v1720
        %v1803 = vadd.f32 %v1594, %v1722
        %v1804 = vadd.f32 %v1596, %v1724
        %v1805 = vadd.f32 %v1598, %v1726
        %v1806 = vadd.f32 %v1600, %v1728
        %v1807 = vadd.f32 %v1602, %v1730
        %v1808 = vadd.f32 %v1604, %v1732
        %v1809 = vadd.f32 %v1606, %v1734
        %v1810 = vadd.f32 %v1608, %v1736
        %v1811 = vadd.f32 %v1610, %v1738
        %v1812 = vadd.f32 %v1612, %v1740
        %v1813 = vadd.f32 %v1614, %v1742
        %v1814 = vadd.f32 %v1616, %v1744
        %v1815 = vadd.f32 %v1618, %v1746
        %v1816 = vadd.f32 %v1620, %v1748
        %v1817 = vadd.f32 %v1622, %v1750
        %v1818 = vadd.f32 %v1624, %v1752
        %v1819 = vadd.f32 %v1626, %v1754
        %v1820 = vadd.f32 %v1628, %v1756
        %1821 = vrot.lane.b32.xlu0 %v1757, 32
        %v1822 = vpop.permute.xlu0 %1821
        %1823 = vrot.lane.b32.xlu0 %v1758, 32
        %v1824 = vpop.permute.xlu0 %1823
        %1825 = vrot.lane.b32.xlu0 %v1759, 32
        %v1826 = vpop.permute.xlu0 %1825
        %1827 = vrot.lane.b32.xlu0 %v1760, 32
        %v1828 = vpop.permute.xlu0 %1827
        %1829 = vrot.lane.b32.xlu0 %v1761, 32
        %v1830 = vpop.permute.xlu0 %1829
        %1831 = vrot.lane.b32.xlu0 %v1762, 32
        %v1832 = vpop.permute.xlu0 %1831
        %1833 = vrot.lane.b32.xlu0 %v1763, 32
        %v1834 = vpop.permute.xlu0 %1833
        %1835 = vrot.lane.b32.xlu0 %v1764, 32
        %v1836 = vpop.permute.xlu0 %1835
        %1837 = vrot.lane.b32.xlu0 %v1765, 32
        %v1838 = vpop.permute.xlu0 %1837
        %1839 = vrot.lane.b32.xlu0 %v1766, 32
        %v1840 = vpop.permute.xlu0 %1839
        %1841 = vrot.lane.b32.xlu0 %v1767, 32
        %v1842 = vpop.permute.xlu0 %1841
        %1843 = vrot.lane.b32.xlu0 %v1768, 32
        %v1844 = vpop.permute.xlu0 %1843
        %1845 = vrot.lane.b32.xlu0 %v1769, 32
        %v1846 = vpop.permute.xlu0 %1845
        %1847 = vrot.lane.b32.xlu0 %v1770, 32
        %v1848 = vpop.permute.xlu0 %1847
        %1849 = vrot.lane.b32.xlu0 %v1771, 32
        %v1850 = vpop.permute.xlu0 %1849
        %1851 = vrot.lane.b32.xlu0 %v1772, 32
        %v1852 = vpop.permute.xlu0 %1851
        %1853 = vrot.lane.b32.xlu0 %v1773, 32
        %v1854 = vpop.permute.xlu0 %1853
        %1855 = vrot.lane.b32.xlu0 %v1774, 32
        %v1856 = vpop.permute.xlu0 %1855
        %1857 = vrot.lane.b32.xlu0 %v1775, 32
        %v1858 = vpop.permute.xlu0 %1857
        %1859 = vrot.lane.b32.xlu0 %v1776, 32
        %v1860 = vpop.permute.xlu0 %1859
        %1861 = vrot.lane.b32.xlu0 %v1777, 32
        %v1862 = vpop.permute.xlu0 %1861
        %1863 = vrot.lane.b32.xlu0 %v1778, 32
        %v1864 = vpop.permute.xlu0 %1863
        %1865 = vrot.lane.b32.xlu0 %v1779, 32
        %v1866 = vpop.permute.xlu0 %1865
        %1867 = vrot.lane.b32.xlu0 %v1780, 32
        %v1868 = vpop.permute.xlu0 %1867
        %1869 = vrot.lane.b32.xlu0 %v1781, 32
        %v1870 = vpop.permute.xlu0 %1869
        %1871 = vrot.lane.b32.xlu0 %v1782, 32
        %v1872 = vpop.permute.xlu0 %1871
        %1873 = vrot.lane.b32.xlu0 %v1783, 32
        %v1874 = vpop.permute.xlu0 %1873
        %1875 = vrot.lane.b32.xlu0 %v1784, 32
        %v1876 = vpop.permute.xlu0 %1875
        %1877 = vrot.lane.b32.xlu0 %v1785, 32
        %v1878 = vpop.permute.xlu0 %1877
        %1879 = vrot.lane.b32.xlu0 %v1786, 32
        %v1880 = vpop.permute.xlu0 %1879
        %1881 = vrot.lane.b32.xlu0 %v1787, 32
        %v1882 = vpop.permute.xlu0 %1881
        %1883 = vrot.lane.b32.xlu0 %v1788, 32
        %v1884 = vpop.permute.xlu0 %1883
        %1885 = vrot.lane.b32.xlu0 %v1789, 32
        %v1886 = vpop.permute.xlu0 %1885
        %1887 = vrot.lane.b32.xlu0 %v1790, 32
        %v1888 = vpop.permute.xlu0 %1887
        %1889 = vrot.lane.b32.xlu0 %v1791, 32
        %v1890 = vpop.permute.xlu0 %1889
        %1891 = vrot.lane.b32.xlu0 %v1792, 32
        %v1892 = vpop.permute.xlu0 %1891
        %1893 = vrot.lane.b32.xlu0 %v1793, 32
        %v1894 = vpop.permute.xlu0 %1893
        %1895 = vrot.lane.b32.xlu0 %v1794, 32
        %v1896 = vpop.permute.xlu0 %1895
        %1897 = vrot.lane.b32.xlu0 %v1795, 32
        %v1898 = vpop.permute.xlu0 %1897
        %1899 = vrot.lane.b32.xlu0 %v1796, 32
        %v1900 = vpop.permute.xlu0 %1899
        %1901 = vrot.lane.b32.xlu0 %v1797, 32
        %v1902 = vpop.permute.xlu0 %1901
        %1903 = vrot.lane.b32.xlu0 %v1798, 32
        %v1904 = vpop.permute.xlu0 %1903
        %1905 = vrot.lane.b32.xlu0 %v1799, 32
        %v1906 = vpop.permute.xlu0 %1905
        %1907 = vrot.lane.b32.xlu0 %v1800, 32
        %v1908 = vpop.permute.xlu0 %1907
        %1909 = vrot.lane.b32.xlu0 %v1801, 32
        %v1910 = vpop.permute.xlu0 %1909
        %1911 = vrot.lane.b32.xlu0 %v1802, 32
        %v1912 = vpop.permute.xlu0 %1911
        %1913 = vrot.lane.b32.xlu0 %v1803, 32
        %v1914 = vpop.permute.xlu0 %1913
        %1915 = vrot.lane.b32.xlu0 %v1804, 32
        %v1916 = vpop.permute.xlu0 %1915
        %1917 = vrot.lane.b32.xlu0 %v1805, 32
        %v1918 = vpop.permute.xlu0 %1917
        %1919 = vrot.lane.b32.xlu0 %v1806, 32
        %v1920 = vpop.permute.xlu0 %1919
        %1921 = vrot.lane.b32.xlu0 %v1807, 32
        %v1922 = vpop.permute.xlu0 %1921
        %1923 = vrot.lane.b32.xlu0 %v1808, 32
        %v1924 = vpop.permute.xlu0 %1923
        %1925 = vrot.lane.b32.xlu0 %v1809, 32
        %v1926 = vpop.permute.xlu0 %1925
        %1927 = vrot.lane.b32.xlu0 %v1810, 32
        %v1928 = vpop.permute.xlu0 %1927
        %1929 = vrot.lane.b32.xlu0 %v1811, 32
        %v1930 = vpop.permute.xlu0 %1929
        %1931 = vrot.lane.b32.xlu0 %v1812, 32
        %v1932 = vpop.permute.xlu0 %1931
        %1933 = vrot.lane.b32.xlu0 %v1813, 32
        %v1934 = vpop.permute.xlu0 %1933
        %1935 = vrot.lane.b32.xlu0 %v1814, 32
        %v1936 = vpop.permute.xlu0 %1935
        %1937 = vrot.lane.b32.xlu0 %v1815, 32
        %v1938 = vpop.permute.xlu0 %1937
        %1939 = vrot.lane.b32.xlu0 %v1816, 32
        %v1940 = vpop.permute.xlu0 %1939
        %1941 = vrot.lane.b32.xlu0 %v1817, 32
        %v1942 = vpop.permute.xlu0 %1941
        %1943 = vrot.lane.b32.xlu0 %v1818, 32
        %v1944 = vpop.permute.xlu0 %1943
        %1945 = vrot.lane.b32.xlu0 %v1819, 32
        %v1946 = vpop.permute.xlu0 %1945
        %1947 = vrot.lane.b32.xlu0 %v1820, 32
        %v1948 = vpop.permute.xlu0 %1947
        %v1949 = vadd.f32 %v1757, %v1822
        %v1950 = vadd.f32 %v1758, %v1824
        %v1951 = vadd.f32 %v1759, %v1826
        %v1952 = vadd.f32 %v1760, %v1828
        %v1953 = vadd.f32 %v1761, %v1830
        %v1954 = vadd.f32 %v1762, %v1832
        %v1955 = vadd.f32 %v1763, %v1834
        %v1956 = vadd.f32 %v1764, %v1836
        %v1957 = vadd.f32 %v1765, %v1838
        %v1958 = vadd.f32 %v1766, %v1840
        %v1959 = vadd.f32 %v1767, %v1842
        %v1960 = vadd.f32 %v1768, %v1844
        %v1961 = vadd.f32 %v1769, %v1846
        %v1962 = vadd.f32 %v1770, %v1848
        %v1963 = vadd.f32 %v1771, %v1850
        %v1964 = vadd.f32 %v1772, %v1852
        %v1965 = vadd.f32 %v1773, %v1854
        %v1966 = vadd.f32 %v1774, %v1856
        %v1967 = vadd.f32 %v1775, %v1858
        %v1968 = vadd.f32 %v1776, %v1860
        %v1969 = vadd.f32 %v1777, %v1862
        %v1970 = vadd.f32 %v1778, %v1864
        %v1971 = vadd.f32 %v1779, %v1866
        %v1972 = vadd.f32 %v1780, %v1868
        %v1973 = vadd.f32 %v1781, %v1870
        %v1974 = vadd.f32 %v1782, %v1872
        %v1975 = vadd.f32 %v1783, %v1874
        %v1976 = vadd.f32 %v1784, %v1876
        %v1977 = vadd.f32 %v1785, %v1878
        %v1978 = vadd.f32 %v1786, %v1880
        %v1979 = vadd.f32 %v1787, %v1882
        %v1980 = vadd.f32 %v1788, %v1884
        %v1981 = vadd.f32 %v1789, %v1886
        %v1982 = vadd.f32 %v1790, %v1888
        %v1983 = vadd.f32 %v1791, %v1890
        %v1984 = vadd.f32 %v1792, %v1892
        %v1985 = vadd.f32 %v1793, %v1894
        %v1986 = vadd.f32 %v1794, %v1896
        %v1987 = vadd.f32 %v1795, %v1898
        %v1988 = vadd.f32 %v1796, %v1900
        %v1989 = vadd.f32 %v1797, %v1902
        %v1990 = vadd.f32 %v1798, %v1904
        %v1991 = vadd.f32 %v1799, %v1906
        %v1992 = vadd.f32 %v1800, %v1908
        %v1993 = vadd.f32 %v1801, %v1910
        %v1994 = vadd.f32 %v1802, %v1912
        %v1995 = vadd.f32 %v1803, %v1914
        %v1996 = vadd.f32 %v1804, %v1916
        %v1997 = vadd.f32 %v1805, %v1918
        %v1998 = vadd.f32 %v1806, %v1920
        %v1999 = vadd.f32 %v1807, %v1922
        %v2000 = vadd.f32 %v1808, %v1924
        %v2001 = vadd.f32 %v1809, %v1926
        %v2002 = vadd.f32 %v1810, %v1928
        %v2003 = vadd.f32 %v1811, %v1930
        %v2004 = vadd.f32 %v1812, %v1932
        %v2005 = vadd.f32 %v1813, %v1934
        %v2006 = vadd.f32 %v1814, %v1936
        %v2007 = vadd.f32 %v1815, %v1938
        %v2008 = vadd.f32 %v1816, %v1940
        %v2009 = vadd.f32 %v1817, %v1942
        %v2010 = vadd.f32 %v1818, %v1944
        %v2011 = vadd.f32 %v1819, %v1946
        %v2012 = vadd.f32 %v1820, %v1948
        %2013 = vrot.lane.b32.xlu0 %v1949, 64
        %v2014 = vpop.permute.xlu0 %2013
        %2015 = vrot.lane.b32.xlu0 %v1950, 64
        %v2016 = vpop.permute.xlu0 %2015
        %2017 = vrot.lane.b32.xlu0 %v1951, 64
        %v2018 = vpop.permute.xlu0 %2017
        %2019 = vrot.lane.b32.xlu0 %v1952, 64
        %v2020 = vpop.permute.xlu0 %2019
        %2021 = vrot.lane.b32.xlu0 %v1953, 64
        %v2022 = vpop.permute.xlu0 %2021
        %2023 = vrot.lane.b32.xlu0 %v1954, 64
        %v2024 = vpop.permute.xlu0 %2023
        %2025 = vrot.lane.b32.xlu0 %v1955, 64
        %v2026 = vpop.permute.xlu0 %2025
        %2027 = vrot.lane.b32.xlu0 %v1956, 64
        %v2028 = vpop.permute.xlu0 %2027
        %2029 = vrot.lane.b32.xlu0 %v1957, 64
        %v2030 = vpop.permute.xlu0 %2029
        %2031 = vrot.lane.b32.xlu0 %v1958, 64
        %v2032 = vpop.permute.xlu0 %2031
        %2033 = vrot.lane.b32.xlu0 %v1959, 64
        %v2034 = vpop.permute.xlu0 %2033
        %2035 = vrot.lane.b32.xlu0 %v1960, 64
        %v2036 = vpop.permute.xlu0 %2035
        %2037 = vrot.lane.b32.xlu0 %v1961, 64
        %v2038 = vpop.permute.xlu0 %2037
        %2039 = vrot.lane.b32.xlu0 %v1962, 64
        %v2040 = vpop.permute.xlu0 %2039
        %2041 = vrot.lane.b32.xlu0 %v1963, 64
        %v2042 = vpop.permute.xlu0 %2041
        %2043 = vrot.lane.b32.xlu0 %v1964, 64
        %v2044 = vpop.permute.xlu0 %2043
        %2045 = vrot.lane.b32.xlu0 %v1965, 64
        %v2046 = vpop.permute.xlu0 %2045
        %2047 = vrot.lane.b32.xlu0 %v1966, 64
        %v2048 = vpop.permute.xlu0 %2047
        %2049 = vrot.lane.b32.xlu0 %v1967, 64
        %v2050 = vpop.permute.xlu0 %2049
        %2051 = vrot.lane.b32.xlu0 %v1968, 64
        %v2052 = vpop.permute.xlu0 %2051
        %2053 = vrot.lane.b32.xlu0 %v1969, 64
        %v2054 = vpop.permute.xlu0 %2053
        %2055 = vrot.lane.b32.xlu0 %v1970, 64
        %v2056 = vpop.permute.xlu0 %2055
        %2057 = vrot.lane.b32.xlu0 %v1971, 64
        %v2058 = vpop.permute.xlu0 %2057
        %2059 = vrot.lane.b32.xlu0 %v1972, 64
        %v2060 = vpop.permute.xlu0 %2059
        %2061 = vrot.lane.b32.xlu0 %v1973, 64
        %v2062 = vpop.permute.xlu0 %2061
        %2063 = vrot.lane.b32.xlu0 %v1974, 64
        %v2064 = vpop.permute.xlu0 %2063
        %2065 = vrot.lane.b32.xlu0 %v1975, 64
        %v2066 = vpop.permute.xlu0 %2065
        %2067 = vrot.lane.b32.xlu0 %v1976, 64
        %v2068 = vpop.permute.xlu0 %2067
        %2069 = vrot.lane.b32.xlu0 %v1977, 64
        %v2070 = vpop.permute.xlu0 %2069
        %2071 = vrot.lane.b32.xlu0 %v1978, 64
        %v2072 = vpop.permute.xlu0 %2071
        %2073 = vrot.lane.b32.xlu0 %v1979, 64
        %v2074 = vpop.permute.xlu0 %2073
        %2075 = vrot.lane.b32.xlu0 %v1980, 64
        %v2076 = vpop.permute.xlu0 %2075
        %2077 = vrot.lane.b32.xlu0 %v1981, 64
        %v2078 = vpop.permute.xlu0 %2077
        %2079 = vrot.lane.b32.xlu0 %v1982, 64
        %v2080 = vpop.permute.xlu0 %2079
        %2081 = vrot.lane.b32.xlu0 %v1983, 64
        %v2082 = vpop.permute.xlu0 %2081
        %2083 = vrot.lane.b32.xlu0 %v1984, 64
        %v2084 = vpop.permute.xlu0 %2083
        %2085 = vrot.lane.b32.xlu0 %v1985, 64
        %v2086 = vpop.permute.xlu0 %2085
        %2087 = vrot.lane.b32.xlu0 %v1986, 64
        %v2088 = vpop.permute.xlu0 %2087
        %2089 = vrot.lane.b32.xlu0 %v1987, 64
        %v2090 = vpop.permute.xlu0 %2089
        %2091 = vrot.lane.b32.xlu0 %v1988, 64
        %v2092 = vpop.permute.xlu0 %2091
        %2093 = vrot.lane.b32.xlu0 %v1989, 64
        %v2094 = vpop.permute.xlu0 %2093
        %2095 = vrot.lane.b32.xlu0 %v1990, 64
        %v2096 = vpop.permute.xlu0 %2095
        %2097 = vrot.lane.b32.xlu0 %v1991, 64
        %v2098 = vpop.permute.xlu0 %2097
        %2099 = vrot.lane.b32.xlu0 %v1992, 64
        %v2100 = vpop.permute.xlu0 %2099
        %2101 = vrot.lane.b32.xlu0 %v1993, 64
        %v2102 = vpop.permute.xlu0 %2101
        %2103 = vrot.lane.b32.xlu0 %v1994, 64
        %v2104 = vpop.permute.xlu0 %2103
        %2105 = vrot.lane.b32.xlu0 %v1995, 64
        %v2106 = vpop.permute.xlu0 %2105
        %2107 = vrot.lane.b32.xlu0 %v1996, 64
        %v2108 = vpop.permute.xlu0 %2107
        %2109 = vrot.lane.b32.xlu0 %v1997, 64
        %v2110 = vpop.permute.xlu0 %2109
        %2111 = vrot.lane.b32.xlu0 %v1998, 64
        %v2112 = vpop.permute.xlu0 %2111
        %2113 = vrot.lane.b32.xlu0 %v1999, 64
        %v2114 = vpop.permute.xlu0 %2113
        %2115 = vrot.lane.b32.xlu0 %v2000, 64
        %v2116 = vpop.permute.xlu0 %2115
        %2117 = vrot.lane.b32.xlu0 %v2001, 64
        %v2118 = vpop.permute.xlu0 %2117
        %2119 = vrot.lane.b32.xlu0 %v2002, 64
        %v2120 = vpop.permute.xlu0 %2119
        %2121 = vrot.lane.b32.xlu0 %v2003, 64
        %v2122 = vpop.permute.xlu0 %2121
        %2123 = vrot.lane.b32.xlu0 %v2004, 64
        %v2124 = vpop.permute.xlu0 %2123
        %2125 = vrot.lane.b32.xlu0 %v2005, 64
        %v2126 = vpop.permute.xlu0 %2125
        %2127 = vrot.lane.b32.xlu0 %v2006, 64
        %v2128 = vpop.permute.xlu0 %2127
        %2129 = vrot.lane.b32.xlu0 %v2007, 64
        %v2130 = vpop.permute.xlu0 %2129
        %2131 = vrot.lane.b32.xlu0 %v2008, 64
        %v2132 = vpop.permute.xlu0 %2131
        %2133 = vrot.lane.b32.xlu0 %v2009, 64
        %v2134 = vpop.permute.xlu0 %2133
        %2135 = vrot.lane.b32.xlu0 %v2010, 64
        %v2136 = vpop.permute.xlu0 %2135
        %2137 = vrot.lane.b32.xlu0 %v2011, 64
        %v2138 = vpop.permute.xlu0 %2137
        %2139 = vrot.lane.b32.xlu0 %v2012, 64
        %v2140 = vpop.permute.xlu0 %2139
        %v2141 = vadd.f32 %v1949, %v2014
        %v2142 = vadd.f32 %v1950, %v2016
        %v2143 = vadd.f32 %v1951, %v2018
        %v2144 = vadd.f32 %v1952, %v2020
        %v2145 = vadd.f32 %v1953, %v2022
        %v2146 = vadd.f32 %v1954, %v2024
        %v2147 = vadd.f32 %v1955, %v2026
        %v2148 = vadd.f32 %v1956, %v2028
        %v2149 = vadd.f32 %v1957, %v2030
        %v2150 = vadd.f32 %v1958, %v2032
        %v2151 = vadd.f32 %v1959, %v2034
        %v2152 = vadd.f32 %v1960, %v2036
        %v2153 = vadd.f32 %v1961, %v2038
        %v2154 = vadd.f32 %v1962, %v2040
        %v2155 = vadd.f32 %v1963, %v2042
        %v2156 = vadd.f32 %v1964, %v2044
        %v2157 = vadd.f32 %v1965, %v2046
        %v2158 = vadd.f32 %v1966, %v2048
        %v2159 = vadd.f32 %v1967, %v2050
        %v2160 = vadd.f32 %v1968, %v2052
        %v2161 = vadd.f32 %v1969, %v2054
        %v2162 = vadd.f32 %v1970, %v2056
        %v2163 = vadd.f32 %v1971, %v2058
        %v2164 = vadd.f32 %v1972, %v2060
        %v2165 = vadd.f32 %v1973, %v2062
        %v2166 = vadd.f32 %v1974, %v2064
        %v2167 = vadd.f32 %v1975, %v2066
        %v2168 = vadd.f32 %v1976, %v2068
        %v2169 = vadd.f32 %v1977, %v2070
        %v2170 = vadd.f32 %v1978, %v2072
        %v2171 = vadd.f32 %v1979, %v2074
        %v2172 = vadd.f32 %v1980, %v2076
        %v2173 = vadd.f32 %v1981, %v2078
        %v2174 = vadd.f32 %v1982, %v2080
        %v2175 = vadd.f32 %v1983, %v2082
        %v2176 = vadd.f32 %v1984, %v2084
        %v2177 = vadd.f32 %v1985, %v2086
        %v2178 = vadd.f32 %v1986, %v2088
        %v2179 = vadd.f32 %v1987, %v2090
        %v2180 = vadd.f32 %v1988, %v2092
        %v2181 = vadd.f32 %v1989, %v2094
        %v2182 = vadd.f32 %v1990, %v2096
        %v2183 = vadd.f32 %v1991, %v2098
        %v2184 = vadd.f32 %v1992, %v2100
        %v2185 = vadd.f32 %v1993, %v2102
        %v2186 = vadd.f32 %v1994, %v2104
        %v2187 = vadd.f32 %v1995, %v2106
        %v2188 = vadd.f32 %v1996, %v2108
        %v2189 = vadd.f32 %v1997, %v2110
        %v2190 = vadd.f32 %v1998, %v2112
        %v2191 = vadd.f32 %v1999, %v2114
        %v2192 = vadd.f32 %v2000, %v2116
        %v2193 = vadd.f32 %v2001, %v2118
        %v2194 = vadd.f32 %v2002, %v2120
        %v2195 = vadd.f32 %v2003, %v2122
        %v2196 = vadd.f32 %v2004, %v2124
        %v2197 = vadd.f32 %v2005, %v2126
        %v2198 = vadd.f32 %v2006, %v2128
        %v2199 = vadd.f32 %v2007, %v2130
        %v2200 = vadd.f32 %v2008, %v2132
        %v2201 = vadd.f32 %v2009, %v2134
        %v2202 = vadd.f32 %v2010, %v2136
        %v2203 = vadd.f32 %v2011, %v2138
        %v2204 = vadd.f32 %v2012, %v2140
        %v2205 = vunpack.c.l.bf16 %v252
        %v2206 = vunpack.c.l.bf16 %v253
        %v2207 = vunpack.c.l.bf16 %v254
        %v2208 = vunpack.c.l.bf16 %v255
        %v2209 = vunpack.c.l.bf16 %v256
        %v2210 = vunpack.c.l.bf16 %v257
        %v2211 = vunpack.c.l.bf16 %v258
        %v2212 = vunpack.c.l.bf16 %v259
        %v2213 = vunpack.c.l.bf16 %v260
        %v2214 = vunpack.c.l.bf16 %v261
        %v2215 = vunpack.c.l.bf16 %v262
        %v2216 = vunpack.c.l.bf16 %v263
        %v2217 = vunpack.c.l.bf16 %v264
        %v2218 = vunpack.c.l.bf16 %v265
        %v2219 = vunpack.c.l.bf16 %v266
        %v2220 = vunpack.c.l.bf16 %v267
        %v2221 = vunpack.c.l.bf16 %v268
        %v2222 = vunpack.c.l.bf16 %v269
        %v2223 = vunpack.c.l.bf16 %v270
        %v2224 = vunpack.c.l.bf16 %v271
        %v2225 = vunpack.c.l.bf16 %v272
        %v2226 = vunpack.c.l.bf16 %v273
        %v2227 = vunpack.c.l.bf16 %v274
        %v2228 = vunpack.c.l.bf16 %v275
        %v2229 = vunpack.c.l.bf16 %v276
        %v2230 = vunpack.c.l.bf16 %v277
        %v2231 = vunpack.c.l.bf16 %v278
        %v2232 = vunpack.c.l.bf16 %v279
        %v2233 = vunpack.c.l.bf16 %v280
        %v2234 = vunpack.c.l.bf16 %v281
        %v2235 = vunpack.c.l.bf16 %v282
        %v2236 = vunpack.c.l.bf16 %v283
        %v2237 = vunpack.c.l.bf16 %v284
        %v2238 = vunpack.c.l.bf16 %v285
        %v2239 = vunpack.c.l.bf16 %v286
        %v2240 = vunpack.c.l.bf16 %v287
        %v2241 = vunpack.c.l.bf16 %v288
        %v2242 = vunpack.c.l.bf16 %v289
        %v2243 = vunpack.c.l.bf16 %v290
        %v2244 = vunpack.c.l.bf16 %v291
        %v2245 = vunpack.c.l.bf16 %v292
        %v2246 = vunpack.c.l.bf16 %v293
        %v2247 = vunpack.c.l.bf16 %v294
        %v2248 = vunpack.c.l.bf16 %v295
        %v2249 = vunpack.c.l.bf16 %v296
        %v2250 = vunpack.c.l.bf16 %v297
        %v2251 = vunpack.c.l.bf16 %v298
        %v2252 = vunpack.c.l.bf16 %v299
        %v2253 = vunpack.c.l.bf16 %v300
        %v2254 = vunpack.c.l.bf16 %v301
        %v2255 = vunpack.c.l.bf16 %v302
        %v2256 = vunpack.c.l.bf16 %v303
        %v2257 = vunpack.c.l.bf16 %v304
        %v2258 = vunpack.c.l.bf16 %v305
        %v2259 = vunpack.c.l.bf16 %v306
        %v2260 = vunpack.c.l.bf16 %v307
        %v2261 = vunpack.c.l.bf16 %v308
        %v2262 = vunpack.c.l.bf16 %v309
        %v2263 = vunpack.c.l.bf16 %v310
        %v2264 = vunpack.c.l.bf16 %v311
        %v2265 = vunpack.c.l.bf16 %v312
        %v2266 = vunpack.c.l.bf16 %v313
        %v2267 = vunpack.c.l.bf16 %v314
        %v2268 = vunpack.c.l.bf16 %v315
        %v2269 = vrcp.pop %v2141
        %v2270 = vrcp.pop %v2142
        %v2271 = vrcp.pop %v2143
        %v2272 = vrcp.pop %v2144
        %v2273 = vrcp.pop %v2145
        %v2274 = vrcp.pop %v2146
        %v2275 = vrcp.pop %v2147
        %v2276 = vrcp.pop %v2148
        %v2277 = vrcp.pop %v2149
        %v2278 = vrcp.pop %v2150
        %v2279 = vrcp.pop %v2151
        %v2280 = vrcp.pop %v2152
        %v2281 = vrcp.pop %v2153
        %v2282 = vrcp.pop %v2154
        %v2283 = vrcp.pop %v2155
        %v2284 = vrcp.pop %v2156
        %v2285 = vrcp.pop %v2157
        %v2286 = vrcp.pop %v2158
        %v2287 = vrcp.pop %v2159
        %v2288 = vrcp.pop %v2160
        %v2289 = vrcp.pop %v2161
        %v2290 = vrcp.pop %v2162
        %v2291 = vrcp.pop %v2163
        %v2292 = vrcp.pop %v2164
        %v2293 = vrcp.pop %v2165
        %v2294 = vrcp.pop %v2166
        %v2295 = vrcp.pop %v2167
        %v2296 = vrcp.pop %v2168
        %v2297 = vrcp.pop %v2169
        %v2298 = vrcp.pop %v2170
        %v2299 = vrcp.pop %v2171
        %v2300 = vrcp.pop %v2172
        %v2301 = vrcp.pop %v2173
        %v2302 = vrcp.pop %v2174
        %v2303 = vrcp.pop %v2175
        %v2304 = vrcp.pop %v2176
        %v2305 = vrcp.pop %v2177
        %v2306 = vrcp.pop %v2178
        %v2307 = vrcp.pop %v2179
        %v2308 = vrcp.pop %v2180
        %v2309 = vrcp.pop %v2181
        %v2310 = vrcp.pop %v2182
        %v2311 = vrcp.pop %v2183
        %v2312 = vrcp.pop %v2184
        %v2313 = vrcp.pop %v2185
        %v2314 = vrcp.pop %v2186
        %v2315 = vrcp.pop %v2187
        %v2316 = vrcp.pop %v2188
        %v2317 = vrcp.pop %v2189
        %v2318 = vrcp.pop %v2190
        %v2319 = vrcp.pop %v2191
        %v2320 = vrcp.pop %v2192
        %v2321 = vrcp.pop %v2193
        %v2322 = vrcp.pop %v2194
        %v2323 = vrcp.pop %v2195
        %v2324 = vrcp.pop %v2196
        %v2325 = vrcp.pop %v2197
        %v2326 = vrcp.pop %v2198
        %v2327 = vrcp.pop %v2199
        %v2328 = vrcp.pop %v2200
        %v2329 = vrcp.pop %v2201
        %v2330 = vrcp.pop %v2202
        %v2331 = vrcp.pop %v2203
        %v2332 = vrcp.pop %v2204
        %v2333 = vmul.f32 %v1502, %v2269
        %v2334 = vmul.f32 %v1504, %v2270
        %v2335 = vmul.f32 %v1506, %v2271
        %v2336 = vmul.f32 %v1508, %v2272
        %v2337 = vmul.f32 %v1510, %v2273
        %v2338 = vmul.f32 %v1512, %v2274
        %v2339 = vmul.f32 %v1514, %v2275
        %v2340 = vmul.f32 %v1516, %v2276
        %v2341 = vmul.f32 %v1518, %v2277
        %v2342 = vmul.f32 %v1520, %v2278
        %v2343 = vmul.f32 %v1522, %v2279
        %v2344 = vmul.f32 %v1524, %v2280
        %v2345 = vmul.f32 %v1526, %v2281
        %v2346 = vmul.f32 %v1528, %v2282
        %v2347 = vmul.f32 %v1530, %v2283
        %v2348 = vmul.f32 %v1532, %v2284
        %v2349 = vmul.f32 %v1534, %v2285
        %v2350 = vmul.f32 %v1536, %v2286
        %v2351 = vmul.f32 %v1538, %v2287
        %v2352 = vmul.f32 %v1540, %v2288
        %v2353 = vmul.f32 %v1542, %v2289
        %v2354 = vmul.f32 %v1544, %v2290
        %v2355 = vmul.f32 %v1546, %v2291
        %v2356 = vmul.f32 %v1548, %v2292
        %v2357 = vmul.f32 %v1550, %v2293
        %v2358 = vmul.f32 %v1552, %v2294
        %v2359 = vmul.f32 %v1554, %v2295
        %v2360 = vmul.f32 %v1556, %v2296
        %v2361 = vmul.f32 %v1558, %v2297
        %v2362 = vmul.f32 %v1560, %v2298
        %v2363 = vmul.f32 %v1562, %v2299
        %v2364 = vmul.f32 %v1564, %v2300
        %v2365 = vmul.f32 %v1566, %v2301
        %v2366 = vmul.f32 %v1568, %v2302
        %v2367 = vmul.f32 %v1570, %v2303
        %v2368 = vmul.f32 %v1572, %v2304
        %v2369 = vmul.f32 %v1574, %v2305
        %v2370 = vmul.f32 %v1576, %v2306
        %v2371 = vmul.f32 %v1578, %v2307
        %v2372 = vmul.f32 %v1580, %v2308
        %v2373 = vmul.f32 %v1582, %v2309
        %v2374 = vmul.f32 %v1584, %v2310
        %v2375 = vmul.f32 %v1586, %v2311
        %v2376 = vmul.f32 %v1588, %v2312
        %v2377 = vmul.f32 %v1590, %v2313
        %v2378 = vmul.f32 %v1592, %v2314
        %v2379 = vmul.f32 %v1594, %v2315
        %v2380 = vmul.f32 %v1596, %v2316
        %v2381 = vmul.f32 %v1598, %v2317
        %v2382 = vmul.f32 %v1600, %v2318
        %v2383 = vmul.f32 %v1602, %v2319
        %v2384 = vmul.f32 %v1604, %v2320
        %v2385 = vmul.f32 %v1606, %v2321
        %v2386 = vmul.f32 %v1608, %v2322
        %v2387 = vmul.f32 %v1610, %v2323
        %v2388 = vmul.f32 %v1612, %v2324
        %v2389 = vmul.f32 %v1614, %v2325
        %v2390 = vmul.f32 %v1616, %v2326
        %v2391 = vmul.f32 %v1618, %v2327
        %v2392 = vmul.f32 %v1620, %v2328
        %v2393 = vmul.f32 %v1622, %v2329
        %v2394 = vmul.f32 %v1624, %v2330
        %v2395 = vmul.f32 %v1626, %v2331
        %v2396 = vmul.f32 %v1628, %v2332
        %v2397 = vmul.f32 %v2205, %v2333
        %v2398 = vmul.f32 %v2206, %v2334
        %v2399 = vmul.f32 %v2207, %v2335
        %v2400 = vmul.f32 %v2208, %v2336
        %v2401 = vmul.f32 %v2209, %v2337
        %v2402 = vmul.f32 %v2210, %v2338
        %v2403 = vmul.f32 %v2211, %v2339
        %v2404 = vmul.f32 %v2212, %v2340
        %v2405 = vmul.f32 %v2213, %v2341
        %v2406 = vmul.f32 %v2214, %v2342
        %v2407 = vmul.f32 %v2215, %v2343
        %v2408 = vmul.f32 %v2216, %v2344
        %v2409 = vmul.f32 %v2217, %v2345
        %v2410 = vmul.f32 %v2218, %v2346
        %v2411 = vmul.f32 %v2219, %v2347
        %v2412 = vmul.f32 %v2220, %v2348
        %v2413 = vmul.f32 %v2221, %v2349
        %v2414 = vmul.f32 %v2222, %v2350
        %v2415 = vmul.f32 %v2223, %v2351
        %v2416 = vmul.f32 %v2224, %v2352
        %v2417 = vmul.f32 %v2225, %v2353
        %v2418 = vmul.f32 %v2226, %v2354
        %v2419 = vmul.f32 %v2227, %v2355
        %v2420 = vmul.f32 %v2228, %v2356
        %v2421 = vmul.f32 %v2229, %v2357
        %v2422 = vmul.f32 %v2230, %v2358
        %v2423 = vmul.f32 %v2231, %v2359
        %v2424 = vmul.f32 %v2232, %v2360
        %v2425 = vmul.f32 %v2233, %v2361
        %v2426 = vmul.f32 %v2234, %v2362
        %v2427 = vmul.f32 %v2235, %v2363
        %v2428 = vmul.f32 %v2236, %v2364
        %v2429 = vmul.f32 %v2237, %v2365
        %v2430 = vmul.f32 %v2238, %v2366
        %v2431 = vmul.f32 %v2239, %v2367
        %v2432 = vmul.f32 %v2240, %v2368
        %v2433 = vmul.f32 %v2241, %v2369
        %v2434 = vmul.f32 %v2242, %v2370
        %v2435 = vmul.f32 %v2243, %v2371
        %v2436 = vmul.f32 %v2244, %v2372
        %v2437 = vmul.f32 %v2245, %v2373
        %v2438 = vmul.f32 %v2246, %v2374
        %v2439 = vmul.f32 %v2247, %v2375
        %v2440 = vmul.f32 %v2248, %v2376
        %v2441 = vmul.f32 %v2249, %v2377
        %v2442 = vmul.f32 %v2250, %v2378
        %v2443 = vmul.f32 %v2251, %v2379
        %v2444 = vmul.f32 %v2252, %v2380
        %v2445 = vmul.f32 %v2253, %v2381
        %v2446 = vmul.f32 %v2254, %v2382
        %v2447 = vmul.f32 %v2255, %v2383
        %v2448 = vmul.f32 %v2256, %v2384
        %v2449 = vmul.f32 %v2257, %v2385
        %v2450 = vmul.f32 %v2258, %v2386
        %v2451 = vmul.f32 %v2259, %v2387
        %v2452 = vmul.f32 %v2260, %v2388
        %v2453 = vmul.f32 %v2261, %v2389
        %v2454 = vmul.f32 %v2262, %v2390
        %v2455 = vmul.f32 %v2263, %v2391
        %v2456 = vmul.f32 %v2264, %v2392
        %v2457 = vmul.f32 %v2265, %v2393
        %v2458 = vmul.f32 %v2266, %v2394
        %v2459 = vmul.f32 %v2267, %v2395
        %v2460 = vmul.f32 %v2268, %v2396
        %v2461 = vld [vmem:[%s2] sm:$0xff]
        %v2462 = vld [vmem:[%s3] sm:$0xff]
        %2464 = vset.pattern.permute.xlu0 0
        %2465 = vperm.xlu0 %2464, %v2462
        %v2466 = vpop.permute.xlu0 %2465
        %2468 = vmatprep.subr.mxu0 0.0
        %2469 = vmatpush1.xpose.msra.mxu0 %v2397
        %2470 = vmatprep.subr.mxu0 0.0
        %2471 = vmatpush1.xpose.msra.mxu0 %v2398
        %2472 = vmatprep.subr.mxu0 0.0
        %2473 = vmatpush1.xpose.msra.mxu0 %v2399
        %2474 = vmatprep.subr.mxu0 0.0
        %2475 = vmatpush1.xpose.msra.mxu0 %v2400
        %2476 = vmatprep.subr.mxu0 0.0
        %2477 = vmatpush1.xpose.msra.mxu0 %v2401
        %2478 = vmatprep.subr.mxu0 0.0
        %2479 = vmatpush1.xpose.msra.mxu0 %v2402
        %2480 = vmatprep.subr.mxu0 0.0
        %2481 = vmatpush1.xpose.msra.mxu0 %v2403
        %2482 = vmatprep.subr.mxu0 0.0
        %2483 = vmatpush1.xpose.msra.mxu0 %v2404
        %2484 = vmatprep.subr.mxu0 0.0
        %2485 = vmatpush1.xpose.msra.mxu0 %v2405
        %2486 = vmatprep.subr.mxu0 0.0
        %2487 = vmatpush1.xpose.msra.mxu0 %v2406
        %2488 = vmatprep.subr.mxu0 0.0
        %2489 = vmatpush1.xpose.msra.mxu0 %v2407
        %2490 = vmatprep.subr.mxu0 0.0
        %2491 = vmatpush1.xpose.msra.mxu0 %v2408
        %2492 = vmatprep.subr.mxu0 0.0
        %2493 = vmatpush1.xpose.msra.mxu0 %v2409
        %2494 = vmatprep.subr.mxu0 0.0
        %2495 = vmatpush1.xpose.msra.mxu0 %v2410
        %2496 = vmatprep.subr.mxu0 0.0
        %2497 = vmatpush1.xpose.msra.mxu0 %v2411
        %2498 = vmatprep.subr.mxu0 0.0
        %2499 = vmatpush1.xpose.msra.mxu0 %v2412
        %2500 = vmatprep.subr.mxu0 0.0
        %2501 = vmatpush1.xpose.msra.mxu0 %v2413
        %2502 = vmatprep.subr.mxu0 0.0
        %2503 = vmatpush1.xpose.msra.mxu0 %v2414
        %2504 = vmatprep.subr.mxu0 0.0
        %2505 = vmatpush1.xpose.msra.mxu0 %v2415
        %2506 = vmatprep.subr.mxu0 0.0
        %2507 = vmatpush1.xpose.msra.mxu0 %v2416
        %2508 = vmatprep.subr.mxu0 0.0
        %2509 = vmatpush1.xpose.msra.mxu0 %v2417
        %2510 = vmatprep.subr.mxu0 0.0
        %2511 = vmatpush1.xpose.msra.mxu0 %v2418
        %2512 = vmatprep.subr.mxu0 0.0
        %2513 = vmatpush1.xpose.msra.mxu0 %v2419
        %2514 = vmatprep.subr.mxu0 0.0
        %2515 = vmatpush1.xpose.msra.mxu0 %v2420
        %2516 = vmatprep.subr.mxu0 0.0
        %2517 = vmatpush1.xpose.msra.mxu0 %v2421
        %2518 = vmatprep.subr.mxu0 0.0
        %2519 = vmatpush1.xpose.msra.mxu0 %v2422
        %2520 = vmatprep.subr.mxu0 0.0
        %2521 = vmatpush1.xpose.msra.mxu0 %v2423
        %2522 = vmatprep.subr.mxu0 0.0
        %2523 = vmatpush1.xpose.msra.mxu0 %v2424
        %2524 = vmatprep.subr.mxu0 0.0
        %2525 = vmatpush1.xpose.msra.mxu0 %v2425
        %2526 = vmatprep.subr.mxu0 0.0
        %2527 = vmatpush1.xpose.msra.mxu0 %v2426
        %2528 = vmatprep.subr.mxu0 0.0
        %2529 = vmatpush1.xpose.msra.mxu0 %v2427
        %2530 = vmatprep.subr.mxu0 0.0
        %2531 = vmatpush1.xpose.msra.mxu0 %v2428
        %2532 = vmatprep.mubr.f32.mxu0 0.0
        %2533 = vmatmul.mubr.f32.gmra.mrb[0].mxu0 %v2461
        %v2534 = vpop.f32.mrb[0].mxu0
        %v2535 = vadd.f32 %v2466, %v2534
        %v2536 = vpop.f32.mrb[0].mxu0
        %v2537 = vadd.f32 %v2466, %v2536
        %2538 = vdwg.mxu0
        %2539 = vmatprep.subr.mxu0 0.0
        %2540 = vmatpush1.xpose.msra.mxu0 %v2429
        %2541 = vmatprep.subr.mxu0 0.0
        %2542 = vmatpush1.xpose.msra.mxu0 %v2430
        %2543 = vmatprep.subr.mxu0 0.0
        %2544 = vmatpush1.xpose.msra.mxu0 %v2431
        %2545 = vmatprep.subr.mxu0 0.0
        %2546 = vmatpush1.xpose.msra.mxu0 %v2432
        %2547 = vmatprep.subr.mxu0 0.0
        %2548 = vmatpush1.xpose.msra.mxu0 %v2433
        %2549 = vmatprep.subr.mxu0 0.0
        %2550 = vmatpush1.xpose.msra.mxu0 %v2434
        %2551 = vmatprep.subr.mxu0 0.0
        %2552 = vmatpush1.xpose.msra.mxu0 %v2435
        %2553 = vmatprep.subr.mxu0 0.0
        %2554 = vmatpush1.xpose.msra.mxu0 %v2436
        %2555 = vmatprep.subr.mxu0 0.0
        %2556 = vmatpush1.xpose.msra.mxu0 %v2437
        %2557 = vmatprep.subr.mxu0 0.0
        %2558 = vmatpush1.xpose.msra.mxu0 %v2438
        %2559 = vmatprep.subr.mxu0 0.0
        %2560 = vmatpush1.xpose.msra.mxu0 %v2439
        %2561 = vmatprep.subr.mxu0 0.0
        %2562 = vmatpush1.xpose.msra.mxu0 %v2440
        %2563 = vmatprep.subr.mxu0 0.0
        %2564 = vmatpush1.xpose.msra.mxu0 %v2441
        %2565 = vmatprep.subr.mxu0 0.0
        %2566 = vmatpush1.xpose.msra.mxu0 %v2442
        %2567 = vmatprep.subr.mxu0 0.0
        %2568 = vmatpush1.xpose.msra.mxu0 %v2443
        %2569 = vmatprep.subr.mxu0 0.0
        %2570 = vmatpush1.xpose.msra.mxu0 %v2444
        %2571 = vmatprep.subr.mxu0 0.0
        %2572 = vmatpush1.xpose.msra.mxu0 %v2445
        %2573 = vmatprep.subr.mxu0 0.0
        %2574 = vmatpush1.xpose.msra.mxu0 %v2446
        %2575 = vmatprep.subr.mxu0 0.0
        %2576 = vmatpush1.xpose.msra.mxu0 %v2447
        %2577 = vmatprep.subr.mxu0 0.0
        %2578 = vmatpush1.xpose.msra.mxu0 %v2448
        %2579 = vmatprep.subr.mxu0 0.0
        %2580 = vmatpush1.xpose.msra.mxu0 %v2449
        %2581 = vmatprep.subr.mxu0 0.0
        %2582 = vmatpush1.xpose.msra.mxu0 %v2450
        %2583 = vmatprep.subr.mxu0 0.0
        %2584 = vmatpush1.xpose.msra.mxu0 %v2451
        %2585 = vmatprep.subr.mxu0 0.0
        %2586 = vmatpush1.xpose.msra.mxu0 %v2452
        %2587 = vmatprep.subr.mxu0 0.0
        %2588 = vmatpush1.xpose.msra.mxu0 %v2453
        %2589 = vmatprep.subr.mxu0 0.0
        %2590 = vmatpush1.xpose.msra.mxu0 %v2454
        %2591 = vmatprep.subr.mxu0 0.0
        %2592 = vmatpush1.xpose.msra.mxu0 %v2455
        %2593 = vmatprep.subr.mxu0 0.0
        %2594 = vmatpush1.xpose.msra.mxu0 %v2456
        %2595 = vmatprep.subr.mxu0 0.0
        %2596 = vmatpush1.xpose.msra.mxu0 %v2457
        %2597 = vmatprep.subr.mxu0 0.0
        %2598 = vmatpush1.xpose.msra.mxu0 %v2458
        %2599 = vmatprep.subr.mxu0 0.0
        %2600 = vmatpush1.xpose.msra.mxu0 %v2459
        %2601 = vmatprep.subr.mxu0 0.0
        %2602 = vmatpush1.xpose.msra.mxu0 %v2460
        %2603 = vmatprep.mubr.f32.mxu0 0.0
        %2604 = vmatmul.mubr.f32.gmra.mrb[0].mxu0 %v2461
        %v2605 = vpop.f32.mrb[0].mxu0
        %v2606 = vadd.f32 %v2466, %v2605
        %v2607 = vpop.f32.mrb[0].mxu0
        %v2608 = vadd.f32 %v2466, %v2607
        %2609 = vdwg.mxu0
        %vm2610 = vcmp.ge.f32.partialorder %v2535, 0.0
        %vm2611 = vcmp.ge.f32.partialorder %v2537, 0.0
        %vm2612 = vcmp.ge.f32.partialorder %v2606, 0.0
        %vm2613 = vcmp.ge.f32.partialorder %v2608, 0.0
        %v2614 = vmul.f32 %v2535, 0.2
        %v2615 = vmul.f32 %v2537, 0.2
        %v2616 = vmul.f32 %v2606, 0.2
        %v2617 = vmul.f32 %v2608, 0.2
        %v2618 = vsel %vm2610, %v2535, %v2614
        %v2619 = vsel %vm2611, %v2537, %v2615
        %v2620 = vsel %vm2612, %v2606, %v2616
        %v2621 = vsel %vm2613, %v2608, %v2617
        %2622 = vst [vmem:[%s248] sm:$0xff] %v2618
        %2623 = vst [vmem:[%s248 + $0x8] sm:$0xff] %v2619
        %2624 = vst [vmem:[%s248 + $0x10] sm:$0xff] %v2620
        %2625 = vst [vmem:[%s248 + $0x18] sm:$0xff] %v2621
        %s2626 = sand.u32 %s135, 1
        %s2627 = scalar_lea.sflag [#allocation4], %s2626
        %s2628 = sand.u32 %s135, 1
        %s2629 = smul.addr %s2628, 32
        %s2630 = scalar_lea.vmem [#allocation7], %s2629
        // Predicated region
        $region45: #{tpu_custom_call.1} parent=35 // pred_check
          %p2631 = pneg %p145
        $region46: #{tpu_custom_call.1} parent=35 // pred_check_branch
          %2633 = sbr.rel (%p2631) target = $region48
        $region47: #{tpu_custom_call.1} parent=35 // pred_region
          %s2634 = smul.u32 4, %s27
          %s2636 = ssub.s32 512, 512
          %2637 = vsyncadd %s2627, %s2636
          %s2638 = smul.addr %s26, 4
          %s2639 = sadd.s32 %s2634, %s2638
          %s2640 = smul.addr %s2639, 128
          %s2641 = scalar_lea.hbm %s4, %s2640
          %s2643 = sshll.u32 %s2630, 4
          %s2644 = int_to_ptr.vmem [resolvable:$true] %s2643
          %2646 = dma.vmem_to_hbm [thread:$0]  %s2644, 512, %s2641, %s2627
        $region48: #{tpu_custom_call.1} parent=35 // pred_fallthru
          _
      $region36: #{tpu_custom_call.1} parent=5 // pred_fallthru
        _
      %p2647 = scmp.le.s32.totalorder 2, %s17
      // Predicated region
      $region49: #{tpu_custom_call.1} parent=5 // pred_check
        %p2648 = pneg %p2647
      $region50: #{tpu_custom_call.1} parent=5 // pred_check_branch
        %2650 = sbr.rel (%p2648) target = $region52
      $region51: #{tpu_custom_call.1} parent=5 // pred_region
        %s2651 = ssub.s32 %s17, 2
        // Predicated region
        $region53: #{tpu_custom_call.1} parent=51 // pred_check
          %p2652 = pneg %p151
        $region54: #{tpu_custom_call.1} parent=51 // pred_check_branch
          %2654 = sbr.rel (%p2652) target = $region56
        $region55: #{tpu_custom_call.1} parent=51 // pred_region
          %s2655 = sand.u32 %s136, 1
          %s2656 = scalar_lea.sflag [#allocation4], %s2655
          %s2657 = sand.u32 %s136, 1
          %s2658 = smul.addr %s2657, 32
          %s2659 = scalar_lea.vmem [#allocation7], %s2658
          %2660 = dma.done %s2656, 512
        $region56: #{tpu_custom_call.1} parent=51 // pred_fallthru
          _
      $region52: #{tpu_custom_call.1} parent=5 // pred_fallthru
        _
    $region6: #{tpu_custom_call.1} parent=1 // loop_footer
      %s21 = sadd.s32 1, %s17
    $region7: #{tpu_custom_call.1} parent=1 // loop_footer_branch
      %16 = sbr.rel target = $region3
    $region8: #{tpu_custom_call.1} parent=1 // loop_exit
      _
    %2661 = vsyncpa [#allocation3], 1
    %s2662 = scalar_lea.sflag [#allocation3], 1
    %2663 = vsyncpa %s2662, 1
    %2664 = vsyncpa [#allocation6], 1
    %2665 = vsyncpa [#allocation4], 1
    %s2666 = scalar_lea.sflag [#allocation4], 1
    %2667 = vsyncpa %s2666, 1

</llo_original>
